<compile_context>
chip_gen: v6e
topology: v6e:2x2x1
jax: 0.10.0
libtpu: 0.0.40
codegen_flags: <defaults>
</compile_context>

<pallas_src>
import numpy as np
import jax
import jax.numpy as jnp
from jax.experimental import pallas as pl
from jax.experimental.pallas import tpu as pltpu


# --------------------- constant selection / averaging matrices ---------------

def _pool_select_packed(h_in, w_in, wp_in, len_in, wp_out, len_out, pad_out):
    """Packed 0/1 matrix extracting the 4 taps of a 2x2/2 max-pool.

    Input slab: conv output laid out flat with row stride `wp_in`, valid at
    g = h*wp_in + w for h < h_in, w < w_in.  Output slab: `len_out` columns with
    row stride `wp_out`; if `pad_out`, pooled cell (i, j) lands at
    (i+1)*wp_out + (j+1) and the surrounding ring stays 0 (zero 'SAME' padding
    for the next conv).  Column block t in [0,4) holds tap (dy, dx)=divmod(t,2).
    """
    h_o, w_o = h_in // 2, w_in // 2
    off = 1 if pad_out else 0
    m = np.zeros((len_in, 4 * len_out), np.float32)
    for t, (dy, dx) in enumerate(((0, 0), (0, 1), (1, 0), (1, 1))):
        for i in range(h_o):
            for j in range(w_o):
                g = (2 * i + dy) * wp_in + (2 * j + dx)
                q = (i + off) * wp_out + (j + off)
                m[g, t * len_out + q] = 1.0
    return jnp.asarray(m)


def _row_mean_matrix(h_r, w_r):
    """(h_r*w_r, w_r) matrix averaging over h for a flat (h, w) slab."""
    m = np.zeros((h_r * w_r, w_r), np.float32)
    for u in range(h_r):
        for v in range(w_r):
            m[u * w_r + v, v] = 1.0 / h_r
    return jnp.asarray(m)


# ------------------------------ fused forward --------------------------------

def model_forward(x_nchw, params, text=None, is_train=True):
    """Mirrors Model.forward with the config documented above.
    `text`/`is_train` are only consumed by the Attn head, unused for CTC."""
    B, Cin, H, W = x_nchw.shape
    C1 = params["conv1_w"].shape[-1]
    C2 = params["conv2_w"].shape[-1]
    NC = params["ctc_w"].shape[-1]
    H2, W2 = H // 2, W // 2
    H4, W4 = H2 // 2, W2 // 2
    WP1, WP2 = W + 2, W2 + 2                 # padded row strides
    L1 = (H + 2) * WP1                       # flat padded input length
    LO1 = (H - 1) * WP1 + W                  # conv1 output slab length
    L2 = (H2 + 2) * WP2                      # flat padded pooled-1 length
    LO2 = (H2 - 1) * WP2 + W2                # conv2 output slab length
    G2 = H4 * W4                             # pooled-2 slab length

    # Transformation stage: 'None' -> identity.
    # Pad the tiny network input once (8 KiB) and flatten rows; everything else
    # (per-layer padding/pooling layout) is handled inside the kernel.
    xpad = jnp.pad(x_nchw, ((0, 0), (0, 0), (1, 1), (1, 1))).reshape(B, Cin, L1)

    # Weights reshaped for the channel-major im2col matmuls.
    w1m = params["conv1_w"].transpose(3, 0, 1, 2).reshape(C1, 9 * Cin)
    w2m = params["conv2_w"].transpose(3, 0, 1, 2).reshape(C2, 9 * C1)
    b1 = params["conv1_b"].reshape(C1, 1)
    b2 = params["conv2_b"].reshape(C2, 1)
    wct = params["ctc_w"].T                  # (NC, C2)
    bc = params["ctc_b"].reshape(NC, 1)

    # Constant pooling / averaging matrices (compile-time constants).
    sel1 = _pool_select_packed(H, W, WP1, LO1, WP2, L2, pad_out=True)
    sel2 = _pool_select_packed(H2, W2, WP2, LO2, W4, G2, pad_out=False)
    avgm = _row_mean_matrix(H4, W4)

    def kernel(x_ref, w1_ref, b1_ref, w2_ref, b2_ref, wct_ref, bc_ref,
               sel1_ref, sel2_ref, avg_ref, o_ref):
        # ---- conv1 (im2col) + bias + ReLU -> (C1, LO1), lane axis = spatial
        x = x_ref[...]                                            # (Cin, L1)
        p = jnp.concatenate(
            [x[:, ky * WP1 + kx: ky * WP1 + kx + LO1]
             for ky in range(3) for kx in range(3)], axis=0)      # (9*Cin, LO1)
        h = jnp.maximum(
            jnp.dot(w1_ref[...], p, preferred_element_type=jnp.float32)
            + b1_ref[...], 0.0)                                   # (C1, LO1)

        # ---- maxpool 2x2 + zero re-pad for conv2 -> (C1, L2)
        e = jnp.dot(h, sel1_ref[...], preferred_element_type=jnp.float32)
        h = jnp.maximum(jnp.maximum(e[:, :L2], e[:, L2:2 * L2]),
                        jnp.maximum(e[:, 2 * L2:3 * L2], e[:, 3 * L2:]))

        # ---- conv2 (im2col) + bias + ReLU -> (C2, LO2)
        p = jnp.concatenate(
            [h[:, ky * WP2 + kx: ky * WP2 + kx + LO2]
             for ky in range(3) for kx in range(3)], axis=0)      # (9*C1, LO2)
        h = jnp.maximum(
            jnp.dot(w2_ref[...], p, preferred_element_type=jnp.float32)
            + b2_ref[...], 0.0)                                   # (C2, LO2)

        # ---- maxpool 2x2 (dense output) -> (C2, H4*W4)
        e = jnp.dot(h, sel2_ref[...], preferred_element_type=jnp.float32)
        h = jnp.maximum(jnp.maximum(e[:, :G2], e[:, G2:2 * G2]),
                        jnp.maximum(e[:, 2 * G2:3 * G2], e[:, 3 * G2:]))

        # ---- AdaptiveAvgPool2d((None,1)) over H + squeeze (= mean over H),
        #      SequenceModeling='None', CTC linear head.
        seq = jnp.dot(h, avg_ref[...], preferred_element_type=jnp.float32)   # (C2, W4)
        pred = jnp.dot(wct_ref[...], seq,
                       preferred_element_type=jnp.float32) + bc_ref[...]     # (NC, W4)
        o_ref[...] = pred.astype(o_ref.dtype)

    out = pl.pallas_call(
        kernel,
        out_shape=jax.ShapeDtypeStruct((B, NC, W4), x_nchw.dtype),
        grid=(B,),
        in_specs=[
            pl.BlockSpec((None, Cin, L1), lambda b: (b, 0, 0)),
            pl.BlockSpec((C1, 9 * Cin), lambda b: (0, 0)),
            pl.BlockSpec((C1, 1), lambda b: (0, 0)),
            pl.BlockSpec((C2, 9 * C1), lambda b: (0, 0)),
            pl.BlockSpec((C2, 1), lambda b: (0, 0)),
            pl.BlockSpec((NC, C2), lambda b: (0, 0)),
            pl.BlockSpec((NC, 1), lambda b: (0, 0)),
            pl.BlockSpec((LO1, 4 * L2), lambda b: (0, 0)),
            pl.BlockSpec((LO2, 4 * G2), lambda b: (0, 0)),
            pl.BlockSpec((G2, W4), lambda b: (0, 0)),
        ],
        out_specs=pl.BlockSpec((None, NC, W4), lambda b: (b, 0, 0)),
        compiler_params=pltpu.CompilerParams(dimension_semantics=("parallel",)),
    )(xpad, w1m, b1, w2m, b2, wct, bc, sel1, sel2, avgm)

    # (B, num_class, W') -> (B, seq_len=W', num_class), matching the reference.
    return jnp.transpose(out, (0, 2, 1))


# ----------------------------- pure-JAX reference ----------------------------

def reference_forward(x_nchw, p):
    x = jnp.transpose(x_nchw, (0, 2, 3, 1))

    def conv(h, w, b):
        y = jax.lax.conv_general_dilated(
            h, w, (1, 1), "SAME",
            dimension_numbers=("NHWC", "HWIO", "NHWC"))
        return jax.nn.relu(y + b)

    def pool(h):
        B, H, W, C = h.shape
        return h.reshape(B, H // 2, 2, W // 2, 2, C).max(axis=(2, 4))

    h = pool(conv(x, p["conv1_w"], p["conv1_b"]))
    h = pool(conv(h, p["conv2_w"], p["conv2_b"]))
    seq = h.mean(axis=1)                               # (B, W', C)
    return seq @ p["ctc_w"] + p["ctc_b"]               # (B, W', num_class)


# ----------------------------------- main -------------------------------------

if __name__ == "__main__":
    # small shapes consistent with an OCR input: opt.input_channel=4,
    # opt.imgH=16, opt.imgW=32, opt.output_channel=32, opt.num_class=12
    B, Cin, H, W = 2, 4, 16, 32
    C1, Cout = 16, 32
    num_class = 12

    key = jax.random.PRNGKey(0)
    kx, k1, k2, k3, k4, k5, k6 = jax.random.split(key, 7)
    params = {
        "conv1_w": 0.1 * jax.random.normal(k1, (3, 3, Cin, C1), jnp.float32),
        "conv1_b": 0.01 * jax.random.normal(k2, (C1,), jnp.float32),
        "conv2_w": 0.1 * jax.random.normal(k3, (3, 3, C1, Cout), jnp.float32),
        "conv2_b": 0.01 * jax.random.normal(k4, (Cout,), jnp.float32),
        "ctc_w": 0.1 * jax.random.normal(k5, (Cout, num_class), jnp.float32),
        "ctc_b": 0.01 * jax.random.normal(k6, (num_class,), jnp.float32),
    }

    x = jax.random.normal(kx, (B, Cin, H, W), jnp.float32)   # NCHW like PyTorch

    out = jax.block_until_ready(model_forward(x, params))
    assert out.shape == (B, W // 4, num_class), out.shape

    ref = reference_forward(x, params)
    if not jnp.allclose(out, ref, rtol=1e-4, atol=1e-4):
        raise SystemExit("MISMATCH: max abs err %e"
                         % float(jnp.max(jnp.abs(out - ref))))

    print("KERNEL_OK")
</pallas_src>

<mosaic_0001>
module attributes {stable_mosaic.version = 11 : i64} {
  func.func @kernel(%arg0: i32, %arg1: memref<1x4x612xf32, #tpu.memory_space<vmem>>, %arg2: memref<16x36xf32, #tpu.memory_space<vmem>>, %arg3: memref<16x1xf32, #tpu.memory_space<vmem>>, %arg4: memref<32x144xf32, #tpu.memory_space<vmem>>, %arg5: memref<32x1xf32, #tpu.memory_space<vmem>>, %arg6: memref<12x32xf32, #tpu.memory_space<vmem>>, %arg7: memref<12x1xf32, #tpu.memory_space<vmem>>, %arg8: memref<542x720xf32, #tpu.memory_space<vmem>>, %arg9: memref<142x128xf32, #tpu.memory_space<vmem>>, %arg10: memref<32x8xf32, #tpu.memory_space<vmem>>, %arg11: memref<1x12x8xf32, #tpu.memory_space<vmem>>) attributes {dimension_semantics = [#tpu.dimension_semantics<parallel>], iteration_bounds = array<i64: 2>, scalar_prefetch = 0 : i64, scratch_operands = 0 : i64, tpu.core_type = #tpu.core_type<tc>, window_params = [{transform_indices = @transform_0, window_bounds = array<i64: 1, 4, 612>}, {pipeline_mode = #tpu.pipeline_mode<synchronous>, transform_indices = @transform_1, window_bounds = array<i64: 16, 36>}, {pipeline_mode = #tpu.pipeline_mode<synchronous>, transform_indices = @transform_2, window_bounds = array<i64: 16, 1>}, {pipeline_mode = #tpu.pipeline_mode<synchronous>, transform_indices = @transform_3, window_bounds = array<i64: 32, 144>}, {pipeline_mode = #tpu.pipeline_mode<synchronous>, transform_indices = @transform_4, window_bounds = array<i64: 32, 1>}, {pipeline_mode = #tpu.pipeline_mode<synchronous>, transform_indices = @transform_5, window_bounds = array<i64: 12, 32>}, {pipeline_mode = #tpu.pipeline_mode<synchronous>, transform_indices = @transform_6, window_bounds = array<i64: 12, 1>}, {pipeline_mode = #tpu.pipeline_mode<synchronous>, transform_indices = @transform_7, window_bounds = array<i64: 542, 720>}, {pipeline_mode = #tpu.pipeline_mode<synchronous>, transform_indices = @transform_8, window_bounds = array<i64: 142, 128>}, {pipeline_mode = #tpu.pipeline_mode<synchronous>, transform_indices = @transform_9, window_bounds = array<i64: 32, 8>}, {transform_indices = @transform_10, window_bounds = array<i64: 1, 12, 8>}]} {
    %c0 = arith.constant 0 : index
    %c0_0 = arith.constant 0 : index
    %c0_1 = arith.constant 0 : index
    %0 = vector.load %arg1[%c0, %c0_0, %c0_1] : memref<1x4x612xf32, #tpu.memory_space<vmem>>, vector<1x4x612xf32>
    %1 = vector.shape_cast %0 : vector<1x4x612xf32> to vector<4x612xf32>
    %2 = vector.extract_strided_slice %1 {offsets = [0, 0], sizes = [4, 542], strides = [1, 1]} : vector<4x612xf32> to vector<4x542xf32>
    %3 = vector.extract_strided_slice %1 {offsets = [0, 1], sizes = [4, 542], strides = [1, 1]} : vector<4x612xf32> to vector<4x542xf32>
    %4 = vector.extract_strided_slice %1 {offsets = [0, 2], sizes = [4, 542], strides = [1, 1]} : vector<4x612xf32> to vector<4x542xf32>
    %5 = vector.extract_strided_slice %1 {offsets = [0, 34], sizes = [4, 542], strides = [1, 1]} : vector<4x612xf32> to vector<4x542xf32>
    %6 = vector.extract_strided_slice %1 {offsets = [0, 35], sizes = [4, 542], strides = [1, 1]} : vector<4x612xf32> to vector<4x542xf32>
    %7 = vector.extract_strided_slice %1 {offsets = [0, 36], sizes = [4, 542], strides = [1, 1]} : vector<4x612xf32> to vector<4x542xf32>
    %8 = vector.extract_strided_slice %1 {offsets = [0, 68], sizes = [4, 542], strides = [1, 1]} : vector<4x612xf32> to vector<4x542xf32>
    %9 = vector.extract_strided_slice %1 {offsets = [0, 69], sizes = [4, 542], strides = [1, 1]} : vector<4x612xf32> to vector<4x542xf32>
    %10 = vector.extract_strided_slice %1 {offsets = [0, 70], sizes = [4, 542], strides = [1, 1]} : vector<4x612xf32> to vector<4x542xf32>
    %11 = tpu.concatenate %2, %3, %4, %5, %6, %7, %8, %9, %10 in 0 : vector<4x542xf32>, vector<4x542xf32>, vector<4x542xf32>, vector<4x542xf32>, vector<4x542xf32>, vector<4x542xf32>, vector<4x542xf32>, vector<4x542xf32>, vector<4x542xf32> -> vector<36x542xf32>
    %c0_2 = arith.constant 0 : index
    %c0_3 = arith.constant 0 : index
    %12 = vector.load %arg2[%c0_2, %c0_3] : memref<16x36xf32, #tpu.memory_space<vmem>>, vector<16x36xf32>
    %cst = arith.constant dense<0.000000e+00> : vector<16x542xf32>
    %13 = tpu.matmul %12, %11, %cst {dimension_numbers = #tpu.dot_dimension_numbers<[1], [0], [0], [1], [0, 0, 1, 1], [], []>} : vector<16x36xf32>, vector<36x542xf32>, vector<16x542xf32> -> vector<16x542xf32>
    %c0_4 = arith.constant 0 : index
    %c0_5 = arith.constant 0 : index
    %14 = vector.load %arg3[%c0_4, %c0_5] : memref<16x1xf32, #tpu.memory_space<vmem>>, vector<16x1xf32>
    %15 = vector.broadcast %14 : vector<16x1xf32> to vector<16x542xf32>
    %16 = arith.addf %13, %15 : vector<16x542xf32>
    %cst_6 = arith.constant 0.000000e+00 : f32
    %17 = vector.broadcast %cst_6 : f32 to vector<16x542xf32>
    %18 = arith.maximumf %16, %17 : vector<16x542xf32>
    %c0_7 = arith.constant 0 : index
    %c0_8 = arith.constant 0 : index
    %19 = vector.load %arg8[%c0_7, %c0_8] : memref<542x720xf32, #tpu.memory_space<vmem>>, vector<542x720xf32>
    %cst_9 = arith.constant dense<0.000000e+00> : vector<16x720xf32>
    %20 = tpu.matmul %18, %19, %cst_9 {dimension_numbers = #tpu.dot_dimension_numbers<[1], [0], [0], [1], [0, 0, 1, 1], [], []>} : vector<16x542xf32>, vector<542x720xf32>, vector<16x720xf32> -> vector<16x720xf32>
    %21 = vector.extract_strided_slice %20 {offsets = [0, 0], sizes = [16, 180], strides = [1, 1]} : vector<16x720xf32> to vector<16x180xf32>
    %22 = vector.extract_strided_slice %20 {offsets = [0, 180], sizes = [16, 180], strides = [1, 1]} : vector<16x720xf32> to vector<16x180xf32>
    %23 = arith.maximumf %21, %22 : vector<16x180xf32>
    %24 = vector.extract_strided_slice %20 {offsets = [0, 360], sizes = [16, 180], strides = [1, 1]} : vector<16x720xf32> to vector<16x180xf32>
    %25 = vector.extract_strided_slice %20 {offsets = [0, 540], sizes = [16, 180], strides = [1, 1]} : vector<16x720xf32> to vector<16x180xf32>
    %26 = arith.maximumf %24, %25 : vector<16x180xf32>
    %27 = arith.maximumf %23, %26 : vector<16x180xf32>
    %28 = vector.extract_strided_slice %27 {offsets = [0, 0], sizes = [16, 142], strides = [1, 1]} : vector<16x180xf32> to vector<16x142xf32>
    %29 = vector.extract_strided_slice %27 {offsets = [0, 1], sizes = [16, 142], strides = [1, 1]} : vector<16x180xf32> to vector<16x142xf32>
    %30 = vector.extract_strided_slice %27 {offsets = [0, 2], sizes = [16, 142], strides = [1, 1]} : vector<16x180xf32> to vector<16x142xf32>
    %31 = vector.extract_strided_slice %27 {offsets = [0, 18], sizes = [16, 142], strides = [1, 1]} : vector<16x180xf32> to vector<16x142xf32>
    %32 = vector.extract_strided_slice %27 {offsets = [0, 19], sizes = [16, 142], strides = [1, 1]} : vector<16x180xf32> to vector<16x142xf32>
    %33 = vector.extract_strided_slice %27 {offsets = [0, 20], sizes = [16, 142], strides = [1, 1]} : vector<16x180xf32> to vector<16x142xf32>
    %34 = vector.extract_strided_slice %27 {offsets = [0, 36], sizes = [16, 142], strides = [1, 1]} : vector<16x180xf32> to vector<16x142xf32>
    %35 = vector.extract_strided_slice %27 {offsets = [0, 37], sizes = [16, 142], strides = [1, 1]} : vector<16x180xf32> to vector<16x142xf32>
    %36 = vector.extract_strided_slice %27 {offsets = [0, 38], sizes = [16, 142], strides = [1, 1]} : vector<16x180xf32> to vector<16x142xf32>
    %37 = tpu.concatenate %28, %29, %30, %31, %32, %33, %34, %35, %36 in 0 : vector<16x142xf32>, vector<16x142xf32>, vector<16x142xf32>, vector<16x142xf32>, vector<16x142xf32>, vector<16x142xf32>, vector<16x142xf32>, vector<16x142xf32>, vector<16x142xf32> -> vector<144x142xf32>
    %c0_10 = arith.constant 0 : index
    %c0_11 = arith.constant 0 : index
    %38 = vector.load %arg4[%c0_10, %c0_11] : memref<32x144xf32, #tpu.memory_space<vmem>>, vector<32x144xf32>
    %cst_12 = arith.constant dense<0.000000e+00> : vector<32x142xf32>
    %39 = tpu.matmul %38, %37, %cst_12 {dimension_numbers = #tpu.dot_dimension_numbers<[1], [0], [0], [1], [0, 0, 1, 1], [], []>} : vector<32x144xf32>, vector<144x142xf32>, vector<32x142xf32> -> vector<32x142xf32>
    %c0_13 = arith.constant 0 : index
    %c0_14 = arith.constant 0 : index
    %40 = vector.load %arg5[%c0_13, %c0_14] : memref<32x1xf32, #tpu.memory_space<vmem>>, vector<32x1xf32>
    %41 = vector.broadcast %40 : vector<32x1xf32> to vector<32x142xf32>
    %42 = arith.addf %39, %41 : vector<32x142xf32>
    %cst_15 = arith.constant 0.000000e+00 : f32
    %43 = vector.broadcast %cst_15 : f32 to vector<32x142xf32>
    %44 = arith.maximumf %42, %43 : vector<32x142xf32>
    %c0_16 = arith.constant 0 : index
    %c0_17 = arith.constant 0 : index
    %45 = vector.load %arg9[%c0_16, %c0_17] : memref<142x128xf32, #tpu.memory_space<vmem>>, vector<142x128xf32>
    %cst_18 = arith.constant dense<0.000000e+00> : vector<32x128xf32>
    %46 = tpu.matmul %44, %45, %cst_18 {dimension_numbers = #tpu.dot_dimension_numbers<[1], [0], [0], [1], [0, 0, 1, 1], [], []>} : vector<32x142xf32>, vector<142x128xf32>, vector<32x128xf32> -> vector<32x128xf32>
    %47 = vector.extract_strided_slice %46 {offsets = [0, 0], sizes = [32, 32], strides = [1, 1]} : vector<32x128xf32> to vector<32x32xf32>
    %48 = vector.extract_strided_slice %46 {offsets = [0, 32], sizes = [32, 32], strides = [1, 1]} : vector<32x128xf32> to vector<32x32xf32>
    %49 = arith.maximumf %47, %48 : vector<32x32xf32>
    %50 = vector.extract_strided_slice %46 {offsets = [0, 64], sizes = [32, 32], strides = [1, 1]} : vector<32x128xf32> to vector<32x32xf32>
    %51 = vector.extract_strided_slice %46 {offsets = [0, 96], sizes = [32, 32], strides = [1, 1]} : vector<32x128xf32> to vector<32x32xf32>
    %52 = arith.maximumf %50, %51 : vector<32x32xf32>
    %53 = arith.maximumf %49, %52 : vector<32x32xf32>
    %c0_19 = arith.constant 0 : index
    %c0_20 = arith.constant 0 : index
    %54 = vector.load %arg10[%c0_19, %c0_20] : memref<32x8xf32, #tpu.memory_space<vmem>>, vector<32x8xf32>
    %cst_21 = arith.constant dense<0.000000e+00> : vector<32x8xf32>
    %55 = tpu.matmul %53, %54, %cst_21 {dimension_numbers = #tpu.dot_dimension_numbers<[1], [0], [0], [1], [0, 0, 1, 1], [], []>} : vector<32x32xf32>, vector<32x8xf32>, vector<32x8xf32> -> vector<32x8xf32>
    %c0_22 = arith.constant 0 : index
    %c0_23 = arith.constant 0 : index
    %56 = vector.load %arg6[%c0_22, %c0_23] : memref<12x32xf32, #tpu.memory_space<vmem>>, vector<12x32xf32>
    %cst_24 = arith.constant dense<0.000000e+00> : vector<12x8xf32>
    %57 = tpu.matmul %56, %55, %cst_24 {dimension_numbers = #tpu.dot_dimension_numbers<[1], [0], [0], [1], [0, 0, 1, 1], [], []>} : vector<12x32xf32>, vector<32x8xf32>, vector<12x8xf32> -> vector<12x8xf32>
    %c0_25 = arith.constant 0 : index
    %c0_26 = arith.constant 0 : index
    %58 = vector.load %arg7[%c0_25, %c0_26] : memref<12x1xf32, #tpu.memory_space<vmem>>, vector<12x1xf32>
    %59 = vector.broadcast %58 : vector<12x1xf32> to vector<12x8xf32>
    %60 = arith.addf %57, %59 : vector<12x8xf32>
    %c0_27 = arith.constant 0 : index
    %c0_28 = arith.constant 0 : index
    %c0_29 = arith.constant 0 : index
    %61 = vector.load %arg11[%c0_27, %c0_28, %c0_29] : memref<1x12x8xf32, #tpu.memory_space<vmem>>, vector<1x12x8xf32>
    %62 = vector.shape_cast %61 : vector<1x12x8xf32> to vector<12x8xf32>
    %63 = vector.shape_cast %60 : vector<12x8xf32> to vector<1x12x8xf32>
    tpu.vector_store %arg11[%c0_27, %c0_28, %c0_29], %63 {strides = array<i32>} : memref<1x12x8xf32, #tpu.memory_space<vmem>>, vector<1x12x8xf32>,
    return
  }
  func.func @transform_0(%arg0: i32) -> (i32, i32, i32) {
    %c0_i32 = arith.constant 0 : i32
    %c0_i32_0 = arith.constant 0 : i32
    %c0_i32_1 = arith.constant 0 : i32
    return %arg0, %c0_i32, %c0_i32_0 : i32, i32, i32
  }
  func.func @transform_1(%arg0: i32) -> (i32, i32) {
    %c0_i32 = arith.constant 0 : i32
    %c0_i32_0 = arith.constant 0 : i32
    %c0_i32_1 = arith.constant 0 : i32
    return %c0_i32, %c0_i32_0 : i32, i32
  }
  func.func @transform_2(%arg0: i32) -> (i32, i32) {
    %c0_i32 = arith.constant 0 : i32
    %c0_i32_0 = arith.constant 0 : i32
    %c0_i32_1 = arith.constant 0 : i32
    return %c0_i32, %c0_i32_0 : i32, i32
  }
  func.func @transform_3(%arg0: i32) -> (i32, i32) {
    %c0_i32 = arith.constant 0 : i32
    %c0_i32_0 = arith.constant 0 : i32
    %c0_i32_1 = arith.constant 0 : i32
    return %c0_i32, %c0_i32_0 : i32, i32
  }
  func.func @transform_4(%arg0: i32) -> (i32, i32) {
    %c0_i32 = arith.constant 0 : i32
    %c0_i32_0 = arith.constant 0 : i32
    %c0_i32_1 = arith.constant 0 : i32
    return %c0_i32, %c0_i32_0 : i32, i32
  }
  func.func @transform_5(%arg0: i32) -> (i32, i32) {
    %c0_i32 = arith.constant 0 : i32
    %c0_i32_0 = arith.constant 0 : i32
    %c0_i32_1 = arith.constant 0 : i32
    return %c0_i32, %c0_i32_0 : i32, i32
  }
  func.func @transform_6(%arg0: i32) -> (i32, i32) {
    %c0_i32 = arith.constant 0 : i32
    %c0_i32_0 = arith.constant 0 : i32
    %c0_i32_1 = arith.constant 0 : i32
    return %c0_i32, %c0_i32_0 : i32, i32
  }
  func.func @transform_7(%arg0: i32) -> (i32, i32) {
    %c0_i32 = arith.constant 0 : i32
    %c0_i32_0 = arith.constant 0 : i32
    %c0_i32_1 = arith.constant 0 : i32
    return %c0_i32, %c0_i32_0 : i32, i32
  }
  func.func @transform_8(%arg0: i32) -> (i32, i32) {
    %c0_i32 = arith.constant 0 : i32
    %c0_i32_0 = arith.constant 0 : i32
    %c0_i32_1 = arith.constant 0 : i32
    return %c0_i32, %c0_i32_0 : i32, i32
  }
  func.func @transform_9(%arg0: i32) -> (i32, i32) {
    %c0_i32 = arith.constant 0 : i32
    %c0_i32_0 = arith.constant 0 : i32
    %c0_i32_1 = arith.constant 0 : i32
    return %c0_i32, %c0_i32_0 : i32, i32
  }
  func.func @transform_10(%arg0: i32) -> (i32, i32, i32) {
    %c0_i32 = arith.constant 0 : i32
    %c0_i32_0 = arith.constant 0 : i32
    %c0_i32_1 = arith.constant 0 : i32
    return %arg0, %c0_i32, %c0_i32_0 : i32, i32, i32
  }
}

</mosaic_0001>

<llo_original>
// kernel: tpu_custom_call.1
$region0: #{tpu_custom_call.1}
  #allocation0 [shape = 'u32[]', space=smem, size = 0x4, offset = 0x4, fixed_abs, tag = 'smem constant byte address 0x4 - core index']
  #allocation1 [shape = 'u32[144,128]{1,0:T(1,128)}', space=vmem, size = 0x12000, scoped, tag = 'internal scratch']
  %s0 = inlined_call_operand.hbm [shape: f32[2,4,612], index: 0, kind: input, shape index: {}]
  %s1 = inlined_call_operand.hbm [shape: f32[16,36], index: 1, kind: input, shape index: {}]
  %s2 = inlined_call_operand.vmem [shape: f32[16,1], index: 2, kind: input, shape index: {}]
  %s3 = inlined_call_operand.hbm [shape: f32[32,144], index: 3, kind: input, shape index: {}]
  %s4 = inlined_call_operand.vmem [shape: f32[32,1], index: 4, kind: input, shape index: {}]
  %s5 = inlined_call_operand.hbm [shape: f32[12,32], index: 5, kind: input, shape index: {}]
  %s6 = inlined_call_operand.vmem [shape: f32[12,1], index: 6, kind: input, shape index: {}]
  %s7 = inlined_call_operand.hbm [shape: f32[542,720], index: 7, kind: input, shape index: {}]
  %s8 = inlined_call_operand.hbm [shape: f32[142,128], index: 8, kind: input, shape index: {}]
  %s9 = inlined_call_operand.vmem [shape: f32[32,8], index: 9, kind: input, shape index: {}]
  %s10 = inlined_call_operand.vmem [shape: f32[2,12,8], index: 10, kind: output, shape index: {}]
  %s11 = sld [smem:[#allocation0]]
  $region97: #{tpu_custom_call.1} parent=0
    _
  %s13 = ssub.s32 1, %s11
  %s14 = scalar_select 0, %s13, %s11
  $region1: #{tpu_custom_call.1} parent=0
    #allocation2 [shape = 'u8[20480]{0}', space=vmem, size = 0x5000, scoped, tag = 'input window, operand 0']
    #allocation3 [shape = 's32[2]{0}', space=sflag, size = 0x8, scoped, tag = 'scoped memory for tpu_custom_call.1']
    #allocation4 [shape = 'u8[8192]{0}', space=vmem, size = 0x2000, scoped, tag = 'input window, operand 1, single buffered']
    #allocation5 [shape = 's32[1]{0}', space=sflag, size = 0x4, scoped, tag = 'scoped memory for tpu_custom_call.1']
    #allocation6 [shape = 'u8[32768]{0}', space=vmem, size = 0x8000, scoped, tag = 'input window, operand 3, single buffered']
    #allocation7 [shape = 'u8[8192]{0}', space=vmem, size = 0x2000, scoped, tag = 'input window, operand 5, single buffered']
    #allocation8 [shape = 's32[1]{0}', space=sflag, size = 0x4, scoped, tag = 'scoped memory for tpu_custom_call.1']
    #allocation9 [shape = 'u8[1671168]{0}', space=vmem, size = 0x198000, scoped, tag = 'input window, operand 7, single buffered']
    #allocation10 [shape = 'u8[73728]{0}', space=vmem, size = 0x12000, scoped, tag = 'input window, operand 8, single buffered']
    #allocation11 [shape = 's32[1]{0}', space=sflag, size = 0x4, scoped, tag = 'scoped memory for tpu_custom_call.1']
    %15 = vsyncpa [#allocation3], 0
    %s16 = scalar_lea.sflag [#allocation3], 1
    %17 = vsyncpa %s16, 0
    %18 = vsyncpa [#allocation5], 0
    %19 = vsyncpa [#allocation8], 0
    %20 = vsyncpa [#allocation11], 0
    loop: start=0, step=1, limit=4
    $region2: #{tpu_custom_call.1} parent=1 // loop_pre_header
      _
    $region3: #{tpu_custom_call.1} parent=1 // loop_header
      %s22 = sphi 0, %s26
      %p23 = scmp.ge.s32.totalorder %s22, 4
      %s32 = sphi 0, %s34
      %s35 = sphi 0, %s32
      %s36 = sphi 0, %s35
      %s52 = sphi 0, %s36
      %s56 = sphi 0, %s56
      %s58 = sphi 0, %s56
      %s59 = sphi 0, %s58
      %s73 = sphi 0, %s59
      %s77 = sphi 0, %s77
      %s79 = sphi 0, %s77
      %s80 = sphi 0, %s79
      %s94 = sphi 0, %s80
      %s98 = sphi 0, %s98
      %s100 = sphi 0, %s98
      %s101 = sphi 0, %s100
      %s115 = sphi 0, %s101
      %s119 = sphi 0, %s119
      %s121 = sphi 0, %s119
      %s122 = sphi 0, %s121
      %s136 = sphi 0, %s122
      %s140 = sphi 0, %s140
      %s142 = sphi 0, %s140
      %s143 = sphi 0, %s142
      %s157 = sphi 0, %s143
      %s161 = sphi 0, %s161
      %s163 = sphi 0, %s161
      %s164 = sphi 0, %s163
      %s178 = sphi 0, %s164
      %s182 = sphi 0, %s182
      %s184 = sphi 0, %s182
      %s185 = sphi 0, %s184
      %s199 = sphi 0, %s185
      %s203 = sphi 0, %s203
      %s205 = sphi 0, %s203
      %s206 = sphi 0, %s205
      %s220 = sphi 0, %s206
      %s224 = sphi 0, %s224
      %s226 = sphi 0, %s224
      %s227 = sphi 0, %s226
      %s241 = sphi 0, %s227
      %s247 = sphi 0, %s249
      %s250 = sphi 0, %s247
      %s251 = sphi 0, %s250
      %s267 = sphi 0, %s251
    $region4: #{tpu_custom_call.1} parent=1 // loop_header_branch
      %25 = sbr.rel (%p23) target = $region8
    $region5: #{tpu_custom_call.1} parent=1 // loop_body
      %s27 = ssub.s32 %s22, 1
      %s28 = ssub.s32 %s22, 2
      %s29 = sadd.s32 %s22, 1
      %s30 = ssub.s32 %s22, %s29
      %p31 = scmp.eq.s32.totalorder %s30, 0
      %s33 = sadd.s32 %s32, 1
      %s34 = scalar_select %p31, %s32, %s33
      %p37 = pneg %p31
      %p38 = scmp.eq.s32.totalorder %s22, 1
      %p39 = por %p37, %p38
      %p40 = scmp.ne.s32.totalorder %s32, %s35
      %p41 = scmp.eq.s32.totalorder %s22, 0
      %p42 = por %p40, %p41
      %p43 = scmp.ne.s32.totalorder %s32, %s35
      %p44 = scmp.eq.s32.totalorder %s27, 1
      %p45 = por %p43, %p44
      %p46 = scmp.ne.s32.totalorder %s35, %s36
      %p47 = scmp.eq.s32.totalorder %s27, 0
      %p48 = por %p46, %p47
      %p49 = scmp.ne.s32.totalorder %s35, %s36
      %p50 = scmp.eq.s32.totalorder %s28, 1
      %p51 = por %p49, %p50
      %p53 = scmp.ne.s32.totalorder %s36, %s52
      %p54 = scmp.eq.s32.totalorder %s28, 0
      %p55 = por %p53, %p54
      %s57 = sadd.s32 %s56, 1
      %p60 = scmp.eq.s32.totalorder %s22, 1
      %p61 = scmp.ne.s32.totalorder %s56, %s58
      %p62 = scmp.eq.s32.totalorder %s22, 0
      %p63 = por %p61, %p62
      %p64 = scmp.ne.s32.totalorder %s56, %s58
      %p65 = scmp.eq.s32.totalorder %s27, 1
      %p66 = por %p64, %p65
      %p67 = scmp.ne.s32.totalorder %s58, %s59
      %p68 = scmp.eq.s32.totalorder %s27, 0
      %p69 = por %p67, %p68
      %p70 = scmp.ne.s32.totalorder %s58, %s59
      %p71 = scmp.eq.s32.totalorder %s28, 1
      %p72 = por %p70, %p71
      %p74 = scmp.ne.s32.totalorder %s59, %s73
      %p75 = scmp.eq.s32.totalorder %s28, 0
      %p76 = por %p74, %p75
      %s78 = sadd.s32 %s77, 1
      %p81 = scmp.eq.s32.totalorder %s22, 1
      %p82 = scmp.ne.s32.totalorder %s77, %s79
      %p83 = scmp.eq.s32.totalorder %s22, 0
      %p84 = por %p82, %p83
      %p85 = scmp.ne.s32.totalorder %s77, %s79
      %p86 = scmp.eq.s32.totalorder %s27, 1
      %p87 = por %p85, %p86
      %p88 = scmp.ne.s32.totalorder %s79, %s80
      %p89 = scmp.eq.s32.totalorder %s27, 0
      %p90 = por %p88, %p89
      %p91 = scmp.ne.s32.totalorder %s79, %s80
      %p92 = scmp.eq.s32.totalorder %s28, 1
      %p93 = por %p91, %p92
      %p95 = scmp.ne.s32.totalorder %s80, %s94
      %p96 = scmp.eq.s32.totalorder %s28, 0
      %p97 = por %p95, %p96
      %s99 = sadd.s32 %s98, 1
      %p102 = scmp.eq.s32.totalorder %s22, 1
      %p103 = scmp.ne.s32.totalorder %s98, %s100
      %p104 = scmp.eq.s32.totalorder %s22, 0
      %p105 = por %p103, %p104
      %p106 = scmp.ne.s32.totalorder %s98, %s100
      %p107 = scmp.eq.s32.totalorder %s27, 1
      %p108 = por %p106, %p107
      %p109 = scmp.ne.s32.totalorder %s100, %s101
      %p110 = scmp.eq.s32.totalorder %s27, 0
      %p111 = por %p109, %p110
      %p112 = scmp.ne.s32.totalorder %s100, %s101
      %p113 = scmp.eq.s32.totalorder %s28, 1
      %p114 = por %p112, %p113
      %p116 = scmp.ne.s32.totalorder %s101, %s115
      %p117 = scmp.eq.s32.totalorder %s28, 0
      %p118 = por %p116, %p117
      %s120 = sadd.s32 %s119, 1
      %p123 = scmp.eq.s32.totalorder %s22, 1
      %p124 = scmp.ne.s32.totalorder %s119, %s121
      %p125 = scmp.eq.s32.totalorder %s22, 0
      %p126 = por %p124, %p125
      %p127 = scmp.ne.s32.totalorder %s119, %s121
      %p128 = scmp.eq.s32.totalorder %s27, 1
      %p129 = por %p127, %p128
      %p130 = scmp.ne.s32.totalorder %s121, %s122
      %p131 = scmp.eq.s32.totalorder %s27, 0
      %p132 = por %p130, %p131
      %p133 = scmp.ne.s32.totalorder %s121, %s122
      %p134 = scmp.eq.s32.totalorder %s28, 1
      %p135 = por %p133, %p134
      %p137 = scmp.ne.s32.totalorder %s122, %s136
      %p138 = scmp.eq.s32.totalorder %s28, 0
      %p139 = por %p137, %p138
      %s141 = sadd.s32 %s140, 1
      %p144 = scmp.eq.s32.totalorder %s22, 1
      %p145 = scmp.ne.s32.totalorder %s140, %s142
      %p146 = scmp.eq.s32.totalorder %s22, 0
      %p147 = por %p145, %p146
      %p148 = scmp.ne.s32.totalorder %s140, %s142
      %p149 = scmp.eq.s32.totalorder %s27, 1
      %p150 = por %p148, %p149
      %p151 = scmp.ne.s32.totalorder %s142, %s143
      %p152 = scmp.eq.s32.totalorder %s27, 0
      %p153 = por %p151, %p152
      %p154 = scmp.ne.s32.totalorder %s142, %s143
      %p155 = scmp.eq.s32.totalorder %s28, 1
      %p156 = por %p154, %p155
      %p158 = scmp.ne.s32.totalorder %s143, %s157
      %p159 = scmp.eq.s32.totalorder %s28, 0
      %p160 = por %p158, %p159
      %s162 = sadd.s32 %s161, 1
      %p165 = scmp.eq.s32.totalorder %s22, 1
      %p166 = scmp.ne.s32.totalorder %s161, %s163
      %p167 = scmp.eq.s32.totalorder %s22, 0
      %p168 = por %p166, %p167
      %p169 = scmp.ne.s32.totalorder %s161, %s163
      %p170 = scmp.eq.s32.totalorder %s27, 1
      %p171 = por %p169, %p170
      %p172 = scmp.ne.s32.totalorder %s163, %s164
      %p173 = scmp.eq.s32.totalorder %s27, 0
      %p174 = por %p172, %p173
      %p175 = scmp.ne.s32.totalorder %s163, %s164
      %p176 = scmp.eq.s32.totalorder %s28, 1
      %p177 = por %p175, %p176
      %p179 = scmp.ne.s32.totalorder %s164, %s178
      %p180 = scmp.eq.s32.totalorder %s28, 0
      %p181 = por %p179, %p180
      %s183 = sadd.s32 %s182, 1
      %p186 = scmp.eq.s32.totalorder %s22, 1
      %p187 = scmp.ne.s32.totalorder %s182, %s184
      %p188 = scmp.eq.s32.totalorder %s22, 0
      %p189 = por %p187, %p188
      %p190 = scmp.ne.s32.totalorder %s182, %s184
      %p191 = scmp.eq.s32.totalorder %s27, 1
      %p192 = por %p190, %p191
      %p193 = scmp.ne.s32.totalorder %s184, %s185
      %p194 = scmp.eq.s32.totalorder %s27, 0
      %p195 = por %p193, %p194
      %p196 = scmp.ne.s32.totalorder %s184, %s185
      %p197 = scmp.eq.s32.totalorder %s28, 1
      %p198 = por %p196, %p197
      %p200 = scmp.ne.s32.totalorder %s185, %s199
      %p201 = scmp.eq.s32.totalorder %s28, 0
      %p202 = por %p200, %p201
      %s204 = sadd.s32 %s203, 1
      %p207 = scmp.eq.s32.totalorder %s22, 1
      %p208 = scmp.ne.s32.totalorder %s203, %s205
      %p209 = scmp.eq.s32.totalorder %s22, 0
      %p210 = por %p208, %p209
      %p211 = scmp.ne.s32.totalorder %s203, %s205
      %p212 = scmp.eq.s32.totalorder %s27, 1
      %p213 = por %p211, %p212
      %p214 = scmp.ne.s32.totalorder %s205, %s206
      %p215 = scmp.eq.s32.totalorder %s27, 0
      %p216 = por %p214, %p215
      %p217 = scmp.ne.s32.totalorder %s205, %s206
      %p218 = scmp.eq.s32.totalorder %s28, 1
      %p219 = por %p217, %p218
      %p221 = scmp.ne.s32.totalorder %s206, %s220
      %p222 = scmp.eq.s32.totalorder %s28, 0
      %p223 = por %p221, %p222
      %s225 = sadd.s32 %s224, 1
      %p228 = scmp.eq.s32.totalorder %s22, 1
      %p229 = scmp.ne.s32.totalorder %s224, %s226
      %p230 = scmp.eq.s32.totalorder %s22, 0
      %p231 = por %p229, %p230
      %p232 = scmp.ne.s32.totalorder %s224, %s226
      %p233 = scmp.eq.s32.totalorder %s27, 1
      %p234 = por %p232, %p233
      %p235 = scmp.ne.s32.totalorder %s226, %s227
      %p236 = scmp.eq.s32.totalorder %s27, 0
      %p237 = por %p235, %p236
      %p238 = scmp.ne.s32.totalorder %s226, %s227
      %p239 = scmp.eq.s32.totalorder %s28, 1
      %p240 = por %p238, %p239
      %p242 = scmp.ne.s32.totalorder %s227, %s241
      %p243 = scmp.eq.s32.totalorder %s28, 0
      %p244 = por %p242, %p243
      %s245 = ssub.s32 %s22, %s29
      %p246 = scmp.eq.s32.totalorder %s245, 0
      %s248 = sadd.s32 %s247, 1
      %s249 = scalar_select %p246, %s247, %s248
      %p252 = pneg %p246
      %p253 = scmp.eq.s32.totalorder %s22, 1
      %p254 = por %p252, %p253
      %p255 = scmp.ne.s32.totalorder %s247, %s250
      %p256 = scmp.eq.s32.totalorder %s22, 0
      %p257 = por %p255, %p256
      %p258 = scmp.ne.s32.totalorder %s247, %s250
      %p259 = scmp.eq.s32.totalorder %s27, 1
      %p260 = por %p258, %p259
      %p261 = scmp.ne.s32.totalorder %s250, %s251
      %p262 = scmp.eq.s32.totalorder %s27, 0
      %p263 = por %p261, %p262
      %p264 = scmp.ne.s32.totalorder %s250, %s251
      %p265 = scmp.eq.s32.totalorder %s28, 1
      %p266 = por %p264, %p265
      %p268 = scmp.ne.s32.totalorder %s251, %s267
      %p269 = scmp.eq.s32.totalorder %s28, 0
      %p270 = por %p268, %p269
      %p271 = scmp.le.s32.totalorder 1, %s22
      %p272 = scmp.lt.s32.totalorder %s22, 3
      %p273 = pnand %p271, %p272
      %p274 = pneg %p273
      // Predicated region
      $region9: #{tpu_custom_call.1} parent=5 // pred_check
        _
      $region10: #{tpu_custom_call.1} parent=5 // pred_check_branch
        %276 = sbr.rel (%p273) target = $region12
      $region11: #{tpu_custom_call.1} parent=5 // pred_region
        %s277 = ssub.s32 %s22, 1
        // Predicated region
        $region13: #{tpu_custom_call.1} parent=11 // pred_check
          %p278 = pneg %p69
        $region14: #{tpu_custom_call.1} parent=11 // pred_check_branch
          %280 = sbr.rel (%p278) target = $region16
        $region15: #{tpu_custom_call.1} parent=11 // pred_region
          %s282 = ssub.s32 256, 256
          %283 = vsyncadd [#allocation5], %s282
          %s284 = sshll.u32 [#allocation4], 4
          %s285 = int_to_ptr.vmem [resolvable:$true] %s284
          %290 = dma.hbm_to_vmem [thread:$0]  %s1, 256, %s285, [#allocation5], 128, 128, 8
        $region16: #{tpu_custom_call.1} parent=11 // pred_fallthru
          _
        // Predicated region
        $region17: #{tpu_custom_call.1} parent=11 // pred_check
          %p291 = pneg %p90
        $region18: #{tpu_custom_call.1} parent=11 // pred_check_branch
          %293 = sbr.rel (%p291) target = $region20
        $region19: #{tpu_custom_call.1} parent=11 // pred_region
          _
        $region20: #{tpu_custom_call.1} parent=11 // pred_fallthru
          _
        // Predicated region
        $region21: #{tpu_custom_call.1} parent=11 // pred_check
          %p294 = pneg %p111
        $region22: #{tpu_custom_call.1} parent=11 // pred_check_branch
          %296 = sbr.rel (%p294) target = $region24
        $region23: #{tpu_custom_call.1} parent=11 // pred_region
          %s298 = ssub.s32 1024, 1024
          %299 = vsyncadd [#allocation5], %s298
          %s300 = sshll.u32 [#allocation6], 4
          %s301 = int_to_ptr.vmem [resolvable:$true] %s300
          %306 = dma.hbm_to_vmem [thread:$0]  %s3, 1024, %s301, [#allocation5], 256, 256, 16
        $region24: #{tpu_custom_call.1} parent=11 // pred_fallthru
          _
        // Predicated region
        $region25: #{tpu_custom_call.1} parent=11 // pred_check
          %p307 = pneg %p132
        $region26: #{tpu_custom_call.1} parent=11 // pred_check_branch
          %309 = sbr.rel (%p307) target = $region28
        $region27: #{tpu_custom_call.1} parent=11 // pred_region
          _
        $region28: #{tpu_custom_call.1} parent=11 // pred_fallthru
          _
        // Predicated region
        $region29: #{tpu_custom_call.1} parent=11 // pred_check
          %p310 = pneg %p153
        $region30: #{tpu_custom_call.1} parent=11 // pred_check_branch
          %312 = sbr.rel (%p310) target = $region32
        $region31: #{tpu_custom_call.1} parent=11 // pred_region
          %s314 = ssub.s32 256, 256
          %315 = vsyncadd [#allocation8], %s314
          %s316 = sshll.u32 [#allocation7], 4
          %s317 = int_to_ptr.vmem [resolvable:$true] %s316
          %322 = dma.hbm_to_vmem [thread:$0]  %s5, 256, %s317, [#allocation8], 128, 128, 8
        $region32: #{tpu_custom_call.1} parent=11 // pred_fallthru
          _
        // Predicated region
        $region33: #{tpu_custom_call.1} parent=11 // pred_check
          %p323 = pneg %p174
        $region34: #{tpu_custom_call.1} parent=11 // pred_check_branch
          %325 = sbr.rel (%p323) target = $region36
        $region35: #{tpu_custom_call.1} parent=11 // pred_region
          _
        $region36: #{tpu_custom_call.1} parent=11 // pred_fallthru
          _
        // Predicated region
        $region37: #{tpu_custom_call.1} parent=11 // pred_check
          %p326 = pneg %p195
        $region38: #{tpu_custom_call.1} parent=11 // pred_check_branch
          %328 = sbr.rel (%p326) target = $region40
        $region39: #{tpu_custom_call.1} parent=11 // pred_region
          %s330 = ssub.s32 52224, 52224
          %331 = vsyncadd [#allocation8], %s330
          %s332 = sshll.u32 [#allocation9], 4
          %s333 = int_to_ptr.vmem [resolvable:$true] %s332
          %338 = dma.hbm_to_vmem [thread:$0]  %s7, 52224, %s333, [#allocation8], 768, 768, 48
        $region40: #{tpu_custom_call.1} parent=11 // pred_fallthru
          _
        // Predicated region
        $region41: #{tpu_custom_call.1} parent=11 // pred_check
          %p339 = pneg %p216
        $region42: #{tpu_custom_call.1} parent=11 // pred_check_branch
          %341 = sbr.rel (%p339) target = $region44
        $region43: #{tpu_custom_call.1} parent=11 // pred_region
          %s343 = ssub.s32 2304, 2304
          %344 = vsyncadd [#allocation11], %s343
          %s345 = sshll.u32 [#allocation10], 4
          %s346 = int_to_ptr.vmem [resolvable:$true] %s345
          %351 = dma.hbm_to_vmem [thread:$0]  %s8, 2304, %s346, [#allocation11], 128, 128, 8
        $region44: #{tpu_custom_call.1} parent=11 // pred_fallthru
          _
        // Predicated region
        $region45: #{tpu_custom_call.1} parent=11 // pred_check
          %p352 = pneg %p237
        $region46: #{tpu_custom_call.1} parent=11 // pred_check_branch
          %354 = sbr.rel (%p352) target = $region48
        $region47: #{tpu_custom_call.1} parent=11 // pred_region
          _
        $region48: #{tpu_custom_call.1} parent=11 // pred_fallthru
          _
      $region12: #{tpu_custom_call.1} parent=5 // pred_fallthru
        _
      %p355 = scmp.lt.s32.totalorder %s22, 2
      // Predicated region
      $region49: #{tpu_custom_call.1} parent=5 // pred_check
        %p356 = pneg %p355
      $region50: #{tpu_custom_call.1} parent=5 // pred_check_branch
        %358 = sbr.rel (%p356) target = $region52
      $region51: #{tpu_custom_call.1} parent=5 // pred_region
        // Predicated region
        $region53: #{tpu_custom_call.1} parent=51 // pred_check
          %p359 = pneg %p42
        $region54: #{tpu_custom_call.1} parent=51 // pred_check_branch
          %361 = sbr.rel (%p359) target = $region56
        $region55: #{tpu_custom_call.1} parent=51 // pred_region
          %s362 = sand.u32 %s32, 1
          %s363 = scalar_lea.sflag [#allocation3], %s362
          %s364 = sand.u32 %s32, 1
          %s365 = smul.addr %s364, 20
          %s366 = scalar_lea.vmem [#allocation2], %s365
          %s368 = ssub.s32 320, 320
          %369 = vsyncadd %s363, %s368
          %s370 = smul.addr %s22, 5
          %s371 = smul.addr %s370, 64
          %s372 = scalar_lea.hbm %s0, %s371
          %s374 = sshll.u32 %s366, 4
          %s375 = int_to_ptr.vmem [resolvable:$true] %s374
          %377 = dma.hbm_to_vmem [thread:$0]  %s372, 320, %s375, %s363
        $region56: #{tpu_custom_call.1} parent=51 // pred_fallthru
          _
      $region52: #{tpu_custom_call.1} parent=5 // pred_fallthru
        _
      %p378 = scmp.le.s32.totalorder 1, %s22
      %p379 = scmp.lt.s32.totalorder %s22, 3
      %p380 = pnand %p378, %p379
      %p381 = pneg %p380
      // Predicated region
      $region57: #{tpu_custom_call.1} parent=5 // pred_check
        _
      $region58: #{tpu_custom_call.1} parent=5 // pred_check_branch
        %383 = sbr.rel (%p380) target = $region60
      $region59: #{tpu_custom_call.1} parent=5 // pred_region
        %s384 = ssub.s32 %s22, 1
        %s385 = sand.u32 %s35, 1
        %s386 = scalar_lea.sflag [#allocation3], %s385
        %s387 = sand.u32 %s35, 1
        %s388 = smul.addr %s387, 20
        %s389 = scalar_lea.vmem [#allocation2], %s388
        // Predicated region
        $region61: #{tpu_custom_call.1} parent=59 // pred_check
          %p390 = pneg %p48
        $region62: #{tpu_custom_call.1} parent=59 // pred_check_branch
          %392 = sbr.rel (%p390) target = $region64
        $region63: #{tpu_custom_call.1} parent=59 // pred_region
          %393 = dma.done %s386, 320
        $region64: #{tpu_custom_call.1} parent=59 // pred_fallthru
          _
        // Predicated region
        $region65: #{tpu_custom_call.1} parent=59 // pred_check
          %p394 = pneg %p69
        $region66: #{tpu_custom_call.1} parent=59 // pred_check_branch
          %396 = sbr.rel (%p394) target = $region68
        $region67: #{tpu_custom_call.1} parent=59 // pred_region
          %397 = dma.done [#allocation5], 256
        $region68: #{tpu_custom_call.1} parent=59 // pred_fallthru
          _
        // Predicated region
        $region69: #{tpu_custom_call.1} parent=59 // pred_check
          %p398 = pneg %p111
        $region70: #{tpu_custom_call.1} parent=59 // pred_check_branch
          %400 = sbr.rel (%p398) target = $region72
        $region71: #{tpu_custom_call.1} parent=59 // pred_region
          %401 = dma.done [#allocation5], 1024
        $region72: #{tpu_custom_call.1} parent=59 // pred_fallthru
          _
        // Predicated region
        $region73: #{tpu_custom_call.1} parent=59 // pred_check
          %p402 = pneg %p153
        $region74: #{tpu_custom_call.1} parent=59 // pred_check_branch
          %404 = sbr.rel (%p402) target = $region76
        $region75: #{tpu_custom_call.1} parent=59 // pred_region
          %405 = dma.done [#allocation8], 256
        $region76: #{tpu_custom_call.1} parent=59 // pred_fallthru
          _
        // Predicated region
        $region77: #{tpu_custom_call.1} parent=59 // pred_check
          %p406 = pneg %p195
        $region78: #{tpu_custom_call.1} parent=59 // pred_check_branch
          %408 = sbr.rel (%p406) target = $region80
        $region79: #{tpu_custom_call.1} parent=59 // pred_region
          %409 = dma.done [#allocation8], 52224
        $region80: #{tpu_custom_call.1} parent=59 // pred_fallthru
          _
        // Predicated region
        $region81: #{tpu_custom_call.1} parent=59 // pred_check
          %p410 = pneg %p216
        $region82: #{tpu_custom_call.1} parent=59 // pred_check_branch
          %412 = sbr.rel (%p410) target = $region84
        $region83: #{tpu_custom_call.1} parent=59 // pred_region
          %413 = dma.done [#allocation11], 2304
        $region84: #{tpu_custom_call.1} parent=59 // pred_fallthru
          _
        %s414 = sand.u32 %s35, 1
        %s415 = scalar_lea.sflag [#allocation3], %s414
        %s416 = sand.u32 %s35, 1
        %s417 = smul.addr %s416, 20
        %s418 = scalar_lea.vmem [#allocation2], %s417
        %p419 = pneg %p48
        %p420 = pneg %p45
        %p421 = pneg %p69
        %p422 = pneg %p66
        %p423 = pneg %p90
        %p424 = pneg %p87
        %p425 = pneg %p111
        %p426 = pneg %p108
        %p427 = pneg %p132
        %p428 = pneg %p129
        %p429 = pneg %p153
        %p430 = pneg %p150
        %p431 = pneg %p174
        %p432 = pneg %p171
        %p433 = pneg %p195
        %p434 = pneg %p192
        %p435 = pneg %p216
        %p436 = pneg %p213
        %p437 = pneg %p237
        %p438 = pneg %p234
        %p439 = pneg %p263
        %p440 = pneg %p260
        %p441 = scmp.lt.s32.totalorder %s27, 1
        %s442 = scalar_select %p441, %s27, 1
        %s443 = smul.addr %s442, 2
        %s444 = smul.addr %s443, 8
        %s445 = scalar_lea.vmem %s10, %s444
        %p446 = scmp.lt.s32.totalorder %s27, 1
        %s447 = scalar_select %p446, %s27, 1
        %s448 = smul.addr %s447, 2
        %s449 = smul.addr %s448, 8
        %s450 = scalar_lea.vmem %s10, %s449
        %v451 = vld [vmem:[%s389] sm:$0xff]
        %v452 = vld [vmem:[%s389 + $0x8] sm:$0xff]
        %v453 = vld [vmem:[%s389 + $0x10] sm:$0xf]
        %v457 = vcombine.high %v451, %v451
        %v458 = vcombine.high %v452, %v452
        %v461 = vcombine.low %v451, %v451
        %v462 = vcombine.low %v452, %v452
        %v463 = vcombine.low %v453, %v453
        %464 = vrot.lane.b32.xlu0 %v461, 127
        %v465 = vpop.permute.xlu0 %464
        %466 = vrot.lane.b32.xlu0 %v451, 127
        %v467 = vpop.permute.xlu0 %466
        %468 = vrot.lane.b32.xlu0 %v462, 127
        %v469 = vpop.permute.xlu0 %468
        %470 = vrot.lane.b32.xlu0 %v452, 127
        %v471 = vpop.permute.xlu0 %470
        %472 = vrot.lane.b32.xlu0 %v463, 127
        %v473 = vpop.permute.xlu0 %472
        %vm474 = vcmask 1039360
        %v475 = vsel %vm474, %v465, %v467
        %v476 = vsel %vm474, %v467, %v469
        %v477 = vsel %vm474, %v469, %v471
        %v478 = vsel %vm474, %v471, %v473
        %484 = vrot.lane.b32.xlu0 %v451, 126
        %v485 = vpop.permute.xlu0 %484
        %486 = vrot.lane.b32.xlu0 %v457, 126
        %v487 = vpop.permute.xlu0 %486
        %488 = vrot.lane.b32.xlu0 %v452, 126
        %v489 = vpop.permute.xlu0 %488
        %490 = vrot.lane.b32.xlu0 %v458, 126
        %v491 = vpop.permute.xlu0 %490
        %492 = vrot.lane.b32.xlu0 %v453, 126
        %v493 = vpop.permute.xlu0 %492
        %vm494 = vcmask 1031168
        %v495 = vsel %vm494, %v485, %v487
        %v496 = vsel %vm494, %v487, %v489
        %v497 = vsel %vm494, %v489, %v491
        %v498 = vsel %vm494, %v491, %v493
        %504 = vrot.lane.b32.xlu0 %v461, 94
        %v505 = vpop.permute.xlu0 %504
        %506 = vrot.lane.b32.xlu0 %v451, 94
        %v507 = vpop.permute.xlu0 %506
        %508 = vrot.lane.b32.xlu0 %v462, 94
        %v509 = vpop.permute.xlu0 %508
        %510 = vrot.lane.b32.xlu0 %v452, 94
        %v511 = vpop.permute.xlu0 %510
        %512 = vrot.lane.b32.xlu0 %v463, 94
        %v513 = vpop.permute.xlu0 %512
        %vm514 = vcmask 769024
        %v515 = vsel %vm514, %v505, %v507
        %v516 = vsel %vm514, %v507, %v509
        %v517 = vsel %vm514, %v509, %v511
        %v518 = vsel %vm514, %v511, %v513
        %524 = vrot.lane.b32.xlu0 %v451, 93
        %v525 = vpop.permute.xlu0 %524
        %526 = vrot.lane.b32.xlu0 %v457, 93
        %v527 = vpop.permute.xlu0 %526
        %528 = vrot.lane.b32.xlu0 %v452, 93
        %v529 = vpop.permute.xlu0 %528
        %530 = vrot.lane.b32.xlu0 %v458, 93
        %v531 = vpop.permute.xlu0 %530
        %532 = vrot.lane.b32.xlu0 %v453, 93
        %v533 = vpop.permute.xlu0 %532
        %vm534 = vcmask 760832
        %v535 = vsel %vm534, %v525, %v527
        %v536 = vsel %vm534, %v527, %v529
        %v537 = vsel %vm534, %v529, %v531
        %v538 = vsel %vm534, %v531, %v533
        %544 = vrot.lane.b32.xlu0 %v461, 92
        %v545 = vpop.permute.xlu0 %544
        %546 = vrot.lane.b32.xlu0 %v451, 92
        %v547 = vpop.permute.xlu0 %546
        %548 = vrot.lane.b32.xlu0 %v462, 92
        %v549 = vpop.permute.xlu0 %548
        %550 = vrot.lane.b32.xlu0 %v452, 92
        %v551 = vpop.permute.xlu0 %550
        %552 = vrot.lane.b32.xlu0 %v463, 92
        %v553 = vpop.permute.xlu0 %552
        %vm554 = vcmask 752640
        %v555 = vsel %vm554, %v545, %v547
        %v556 = vsel %vm554, %v547, %v549
        %v557 = vsel %vm554, %v549, %v551
        %v558 = vsel %vm554, %v551, %v553
        %564 = vrot.lane.b32.xlu0 %v451, 60
        %v565 = vpop.permute.xlu0 %564
        %566 = vrot.lane.b32.xlu0 %v457, 60
        %v567 = vpop.permute.xlu0 %566
        %568 = vrot.lane.b32.xlu0 %v452, 60
        %v569 = vpop.permute.xlu0 %568
        %570 = vrot.lane.b32.xlu0 %v458, 60
        %v571 = vpop.permute.xlu0 %570
        %572 = vrot.lane.b32.xlu0 %v453, 60
        %v573 = vpop.permute.xlu0 %572
        %vm574 = vcmask 490496
        %v575 = vsel %vm574, %v565, %v567
        %v576 = vsel %vm574, %v567, %v569
        %v577 = vsel %vm574, %v569, %v571
        %v578 = vsel %vm574, %v571, %v573
        %584 = vrot.lane.b32.xlu0 %v461, 59
        %v585 = vpop.permute.xlu0 %584
        %586 = vrot.lane.b32.xlu0 %v451, 59
        %v587 = vpop.permute.xlu0 %586
        %588 = vrot.lane.b32.xlu0 %v462, 59
        %v589 = vpop.permute.xlu0 %588
        %590 = vrot.lane.b32.xlu0 %v452, 59
        %v591 = vpop.permute.xlu0 %590
        %592 = vrot.lane.b32.xlu0 %v463, 59
        %v593 = vpop.permute.xlu0 %592
        %vm594 = vcmask 482304
        %v595 = vsel %vm594, %v585, %v587
        %v596 = vsel %vm594, %v587, %v589
        %v597 = vsel %vm594, %v589, %v591
        %v598 = vsel %vm594, %v591, %v593
        %604 = vrot.lane.b32.xlu0 %v451, 58
        %v605 = vpop.permute.xlu0 %604
        %606 = vrot.lane.b32.xlu0 %v457, 58
        %v607 = vpop.permute.xlu0 %606
        %608 = vrot.lane.b32.xlu0 %v452, 58
        %v609 = vpop.permute.xlu0 %608
        %610 = vrot.lane.b32.xlu0 %v458, 58
        %v611 = vpop.permute.xlu0 %610
        %612 = vrot.lane.b32.xlu0 %v453, 58
        %v613 = vpop.permute.xlu0 %612
        %vm614 = vcmask 474112
        %v615 = vsel %vm614, %v605, %v607
        %v616 = vsel %vm614, %v607, %v609
        %v617 = vsel %vm614, %v609, %v611
        %v618 = vsel %vm614, %v611, %v613
        %vm619 = vcmask 1043456
        %v620 = vsel %vm619, %v451, %v475
        %v621 = vsel %vm619, %v457, %v476
        %v622 = vsel %vm619, %v452, %v477
        %v623 = vsel %vm619, %v458, %v478
        %v624 = vsel %vm619, %v453, %v473
        %v625 = vsel %vm619, %v495, %v515
        %v626 = vsel %vm619, %v496, %v516
        %v627 = vsel %vm619, %v497, %v517
        %v628 = vsel %vm619, %v498, %v518
        %v629 = vsel %vm619, %v493, %v513
        %v630 = vsel %vm619, %v535, %v555
        %v631 = vsel %vm619, %v536, %v556
        %v632 = vsel %vm619, %v537, %v557
        %v633 = vsel %vm619, %v538, %v558
        %v634 = vsel %vm619, %v533, %v553
        %v635 = vsel %vm619, %v575, %v595
        %v636 = vsel %vm619, %v576, %v596
        %v637 = vsel %vm619, %v577, %v597
        %v638 = vsel %vm619, %v578, %v598
        %v639 = vsel %vm619, %v573, %v593
        %v640 = vld [vmem:[#allocation4] sm:$0xff]
        %v641 = vld [vmem:[#allocation4 + $0x8] sm:$0xff]
        %v642 = vld [vmem:[%s2] sm:$0xff]
        %v643 = vld [vmem:[%s2 + $0x8] sm:$0xff]
        %645 = vset.pattern.permute.xlu0 0
        %646 = vperm.xlu0 %645, %v642
        %v647 = vpop.permute.xlu0 %646
        %650 = vset.pattern.permute.xlu0 0
        %651 = vperm.xlu0 %650, %v643
        %v652 = vpop.permute.xlu0 %651
        %vm654 = vcmask 293888
        %v656 = vsel %vm654, %v640, 0
        %v659 = vsel %vm654, %v641, 0
        %v661 = vsel %vm619, %v615, 0
        %v663 = vsel %vm619, %v616, 0
        %v665 = vsel %vm619, %v617, 0
        %v667 = vsel %vm619, %v618, 0
        %v669 = vsel %vm619, %v613, 0
        %671 = vmatprep.subr.mxu0 0.0
        %672 = vmatpush1.msra.mxu0 0.0
        %673 = vmatprep.subr.mxu0 0.0
        %674 = vmatpush1.msra.mxu0 0.0
        %675 = vmatprep.subr.mxu0 0.0
        %676 = vmatpush1.msra.mxu0 0.0
        %677 = vmatprep.subr.mxu0 0.0
        %678 = vmatpush1.msra.mxu0 0.0
        %679 = vmatprep.subr.mxu0 0.0
        %680 = vmatpush1.msra.mxu0 0.0
        %681 = vmatprep.subr.mxu0 0.0
        %682 = vmatpush1.msra.mxu0 0.0
        %683 = vmatprep.subr.mxu0 0.0
        %684 = vmatpush1.msra.mxu0 0.0
        %685 = vmatprep.subr.mxu0 0.0
        %686 = vmatpush1.msra.mxu0 0.0
        %687 = vmatprep.subr.mxu0 0.0
        %688 = vmatpush1.msra.mxu0 0.0
        %689 = vmatprep.subr.mxu0 0.0
        %690 = vmatpush1.msra.mxu0 0.0
        %691 = vmatprep.subr.mxu0 0.0
        %692 = vmatpush1.msra.mxu0 0.0
        %693 = vmatprep.subr.mxu0 %v663
        %694 = vmatpush1.msra.mxu0 %v661
        %695 = vmatprep.subr.mxu0 %v636
        %696 = vmatpush1.msra.mxu0 %v635
        %697 = vmatprep.subr.mxu0 %v631
        %698 = vmatpush1.msra.mxu0 %v630
        %699 = vmatprep.subr.mxu0 %v626
        %700 = vmatpush1.msra.mxu0 %v625
        %701 = vmatprep.subr.mxu0 %v621
        %702 = vmatpush1.msra.mxu0 %v620
        %703 = vmatprep.subr.mxu0 0.0
        %704 = vmatpush2.msra.mxu0 0.0
        %705 = vmatprep.subr.mxu0 0.0
        %706 = vmatpush2.msra.mxu0 0.0
        %707 = vmatprep.subr.mxu0 0.0
        %708 = vmatpush2.msra.mxu0 0.0
        %709 = vmatprep.subr.mxu0 0.0
        %710 = vmatpush2.msra.mxu0 0.0
        %711 = vmatprep.subr.mxu0 0.0
        %712 = vmatpush2.msra.mxu0 0.0
        %713 = vmatprep.subr.mxu0 0.0
        %714 = vmatpush2.msra.mxu0 0.0
        %715 = vmatprep.subr.mxu0 0.0
        %716 = vmatpush2.msra.mxu0 0.0
        %717 = vmatprep.subr.mxu0 0.0
        %718 = vmatpush2.msra.mxu0 0.0
        %719 = vmatprep.subr.mxu0 0.0
        %720 = vmatpush2.msra.mxu0 0.0
        %721 = vmatprep.subr.mxu0 0.0
        %722 = vmatpush2.msra.mxu0 0.0
        %723 = vmatprep.subr.mxu0 0.0
        %724 = vmatpush2.msra.mxu0 0.0
        %725 = vmatprep.subr.mxu0 0.0
        %726 = vmatpush2.msra.mxu0 0.0
        %727 = vmatprep.subr.mxu0 0.0
        %728 = vmatpush2.msra.mxu0 0.0
        %729 = vmatprep.subr.mxu0 0.0
        %730 = vmatpush2.msra.mxu0 0.0
        %731 = vmatprep.subr.mxu0 0.0
        %732 = vmatpush2.msra.mxu0 0.0
        %733 = vmatprep.subr.mxu0 0.0
        %734 = vmatpush2.msra.mxu0 0.0
        %735 = vmatprep.mubr.f32.mxu0 0.0
        %736 = vmatmul.mubr.f32.gmra.mxu0 %v656
        %v737 = vpop.f32.mrf.mxu0
        %v738 = vadd.f32 %v647, %v737
        %v739 = vpop.f32.mrf.mxu0
        %v740 = vadd.f32 %v647, %v739
        %741 = vmatprep.mubr.f32.mxu0 0.0
        %742 = vmatmul.mubr.f32.gmra.mxu0 %v659
        %v743 = vpop.f32.mrf.mxu0
        %v744 = vadd.f32 %v652, %v743
        %v745 = vpop.f32.mrf.mxu0
        %v746 = vadd.f32 %v652, %v745
        %747 = vdwg.mxu0
        %748 = vmatprep.subr.mxu0 0.0
        %749 = vmatpush1.msra.mxu0 0.0
        %750 = vmatprep.subr.mxu0 0.0
        %751 = vmatpush1.msra.mxu0 0.0
        %752 = vmatprep.subr.mxu0 0.0
        %753 = vmatpush1.msra.mxu0 0.0
        %754 = vmatprep.subr.mxu0 0.0
        %755 = vmatpush1.msra.mxu0 0.0
        %756 = vmatprep.subr.mxu0 0.0
        %757 = vmatpush1.msra.mxu0 0.0
        %758 = vmatprep.subr.mxu0 0.0
        %759 = vmatpush1.msra.mxu0 0.0
        %760 = vmatprep.subr.mxu0 0.0
        %761 = vmatpush1.msra.mxu0 0.0
        %762 = vmatprep.subr.mxu0 0.0
        %763 = vmatpush1.msra.mxu0 0.0
        %764 = vmatprep.subr.mxu0 0.0
        %765 = vmatpush1.msra.mxu0 0.0
        %766 = vmatprep.subr.mxu0 0.0
        %767 = vmatpush1.msra.mxu0 0.0
        %768 = vmatprep.subr.mxu0 0.0
        %769 = vmatpush1.msra.mxu0 0.0
        %770 = vmatprep.subr.mxu0 %v667
        %771 = vmatpush1.msra.mxu0 %v665
        %772 = vmatprep.subr.mxu0 %v638
        %773 = vmatpush1.msra.mxu0 %v637
        %774 = vmatprep.subr.mxu0 %v633
        %775 = vmatpush1.msra.mxu0 %v632
        %776 = vmatprep.subr.mxu0 %v628
        %777 = vmatpush1.msra.mxu0 %v627
        %778 = vmatprep.subr.mxu0 %v623
        %779 = vmatpush1.msra.mxu0 %v622
        %780 = vmatprep.subr.mxu0 0.0
        %781 = vmatpush2.msra.mxu0 0.0
        %782 = vmatprep.subr.mxu0 0.0
        %783 = vmatpush2.msra.mxu0 0.0
        %784 = vmatprep.subr.mxu0 0.0
        %785 = vmatpush2.msra.mxu0 0.0
        %786 = vmatprep.subr.mxu0 0.0
        %787 = vmatpush2.msra.mxu0 0.0
        %788 = vmatprep.subr.mxu0 0.0
        %789 = vmatpush2.msra.mxu0 0.0
        %790 = vmatprep.subr.mxu0 0.0
        %791 = vmatpush2.msra.mxu0 0.0
        %792 = vmatprep.subr.mxu0 0.0
        %793 = vmatpush2.msra.mxu0 0.0
        %794 = vmatprep.subr.mxu0 0.0
        %795 = vmatpush2.msra.mxu0 0.0
        %796 = vmatprep.subr.mxu0 0.0
        %797 = vmatpush2.msra.mxu0 0.0
        %798 = vmatprep.subr.mxu0 0.0
        %799 = vmatpush2.msra.mxu0 0.0
        %800 = vmatprep.subr.mxu0 0.0
        %801 = vmatpush2.msra.mxu0 0.0
        %802 = vmatprep.subr.mxu0 0.0
        %803 = vmatpush2.msra.mxu0 0.0
        %804 = vmatprep.subr.mxu0 0.0
        %805 = vmatpush2.msra.mxu0 0.0
        %806 = vmatprep.subr.mxu0 0.0
        %807 = vmatpush2.msra.mxu0 0.0
        %808 = vmatprep.subr.mxu0 0.0
        %809 = vmatpush2.msra.mxu0 0.0
        %810 = vmatprep.subr.mxu0 0.0
        %811 = vmatpush2.msra.mxu0 0.0
        %812 = vmatprep.mubr.f32.mxu0 0.0
        %813 = vmatmul.mubr.f32.gmra.mxu0 %v656
        %v814 = vpop.f32.mrf.mxu0
        %v815 = vadd.f32 %v647, %v814
        %v816 = vpop.f32.mrf.mxu0
        %v817 = vadd.f32 %v647, %v816
        %818 = vmatprep.mubr.f32.mxu0 0.0
        %819 = vmatmul.mubr.f32.gmra.mxu0 %v659
        %v820 = vpop.f32.mrf.mxu0
        %v821 = vadd.f32 %v652, %v820
        %v822 = vpop.f32.mrf.mxu0
        %v823 = vadd.f32 %v652, %v822
        %824 = vdwg.mxu0
        %825 = vmatprep.subr.mxu0 0.0
        %826 = vmatpush1.msra.mxu0 0.0
        %827 = vmatprep.subr.mxu0 0.0
        %828 = vmatpush1.msra.mxu0 0.0
        %829 = vmatprep.subr.mxu0 0.0
        %830 = vmatpush1.msra.mxu0 0.0
        %831 = vmatprep.subr.mxu0 0.0
        %832 = vmatpush1.msra.mxu0 0.0
        %833 = vmatprep.subr.mxu0 0.0
        %834 = vmatpush1.msra.mxu0 0.0
        %835 = vmatprep.subr.mxu0 0.0
        %836 = vmatpush1.msra.mxu0 0.0
        %837 = vmatprep.subr.mxu0 0.0
        %838 = vmatpush1.msra.mxu0 0.0
        %839 = vmatprep.subr.mxu0 0.0
        %840 = vmatpush1.msra.mxu0 0.0
        %841 = vmatprep.subr.mxu0 0.0
        %842 = vmatpush1.msra.mxu0 0.0
        %843 = vmatprep.subr.mxu0 0.0
        %844 = vmatpush1.msra.mxu0 0.0
        %845 = vmatprep.subr.mxu0 0.0
        %846 = vmatpush1.msra.mxu0 0.0
        %847 = vmatprep.subr.mxu0 0.0
        %848 = vmatpush1.msra.mxu0 %v669
        %849 = vmatprep.subr.mxu0 0.0
        %850 = vmatpush1.msra.mxu0 %v639
        %851 = vmatprep.subr.mxu0 0.0
        %852 = vmatpush1.msra.mxu0 %v634
        %853 = vmatprep.subr.mxu0 0.0
        %854 = vmatpush1.msra.mxu0 %v629
        %855 = vmatprep.subr.mxu0 0.0
        %856 = vmatpush1.msra.mxu0 %v624
        %857 = vmatprep.subr.mxu0 0.0
        %858 = vmatpush2.msra.mxu0 0.0
        %859 = vmatprep.subr.mxu0 0.0
        %860 = vmatpush2.msra.mxu0 0.0
        %861 = vmatprep.subr.mxu0 0.0
        %862 = vmatpush2.msra.mxu0 0.0
        %863 = vmatprep.subr.mxu0 0.0
        %864 = vmatpush2.msra.mxu0 0.0
        %865 = vmatprep.subr.mxu0 0.0
        %866 = vmatpush2.msra.mxu0 0.0
        %867 = vmatprep.subr.mxu0 0.0
        %868 = vmatpush2.msra.mxu0 0.0
        %869 = vmatprep.subr.mxu0 0.0
        %870 = vmatpush2.msra.mxu0 0.0
        %871 = vmatprep.subr.mxu0 0.0
        %872 = vmatpush2.msra.mxu0 0.0
        %873 = vmatprep.subr.mxu0 0.0
        %874 = vmatpush2.msra.mxu0 0.0
        %875 = vmatprep.subr.mxu0 0.0
        %876 = vmatpush2.msra.mxu0 0.0
        %877 = vmatprep.subr.mxu0 0.0
        %878 = vmatpush2.msra.mxu0 0.0
        %879 = vmatprep.subr.mxu0 0.0
        %880 = vmatpush2.msra.mxu0 0.0
        %881 = vmatprep.subr.mxu0 0.0
        %882 = vmatpush2.msra.mxu0 0.0
        %883 = vmatprep.subr.mxu0 0.0
        %884 = vmatpush2.msra.mxu0 0.0
        %885 = vmatprep.subr.mxu0 0.0
        %886 = vmatpush2.msra.mxu0 0.0
        %887 = vmatprep.subr.mxu0 0.0
        %888 = vmatpush2.msra.mxu0 0.0
        %889 = vmatprep.mubr.f32.mxu0 0.0
        %890 = vmatmul.mubr.f32.gmra.mxu0 %v656
        %v891 = vpop.f32.mrf.mxu0
        %v892 = vadd.f32 %v647, %v891
        %v893 = vpop.f32.mrf.mxu0
        %894 = vmatprep.mubr.f32.mxu0 0.0
        %895 = vmatmul.mubr.f32.gmra.mxu0 %v659
        %v896 = vpop.f32.mrf.mxu0
        %v897 = vadd.f32 %v652, %v896
        %v898 = vpop.f32.mrf.mxu0
        %899 = vdwg.mxu0
        %v900 = vmax.f32 %v738, 0.0
        %v901 = vmax.f32 %v740, 0.0
        %v902 = vmax.f32 %v815, 0.0
        %v903 = vmax.f32 %v817, 0.0
        %v904 = vmax.f32 %v892, 0.0
        %v905 = vmax.f32 %v744, 0.0
        %v906 = vmax.f32 %v746, 0.0
        %v907 = vmax.f32 %v821, 0.0
        %v908 = vmax.f32 %v823, 0.0
        %v909 = vmax.f32 %v897, 0.0
        %v910 = vld [vmem:[#allocation9] sm:$0xff]
        %v911 = vld [vmem:[#allocation9 + $0x8] sm:$0xff]
        %v912 = vld [vmem:[#allocation9 + $0x10] sm:$0xff]
        %v913 = vld [vmem:[#allocation9 + $0x18] sm:$0xff]
        %v914 = vld [vmem:[#allocation9 + $0x20] sm:$0xff]
        %v915 = vld [vmem:[#allocation9 + $0x28] sm:$0xff]
        %v916 = vld [vmem:[#allocation9 + $0x30] sm:$0xff]
        %v917 = vld [vmem:[#allocation9 + $0x38] sm:$0xff]
        %v918 = vld [vmem:[#allocation9 + $0x40] sm:$0xff]
        %v919 = vld [vmem:[#allocation9 + $0x48] sm:$0xff]
        %v920 = vld [vmem:[#allocation9 + $0x50] sm:$0xff]
        %v921 = vld [vmem:[#allocation9 + $0x58] sm:$0xff]
        %v922 = vld [vmem:[#allocation9 + $0x60] sm:$0xff]
        %v923 = vld [vmem:[#allocation9 + $0x68] sm:$0xff]
        %v924 = vld [vmem:[#allocation9 + $0x70] sm:$0xff]
        %v925 = vld [vmem:[#allocation9 + $0x78] sm:$0xff]
        %v926 = vld [vmem:[#allocation9 + $0x80] sm:$0xff]
        %v927 = vld [vmem:[#allocation9 + $0x88] sm:$0xff]
        %v928 = vld [vmem:[#allocation9 + $0x90] sm:$0xff]
        %v929 = vld [vmem:[#allocation9 + $0x98] sm:$0xff]
        %v930 = vld [vmem:[#allocation9 + $0xa0] sm:$0xff]
        %v931 = vld [vmem:[#allocation9 + $0xa8] sm:$0xff]
        %v932 = vld [vmem:[#allocation9 + $0xb0] sm:$0xff]
        %v933 = vld [vmem:[#allocation9 + $0xb8] sm:$0xff]
        %v934 = vld [vmem:[#allocation9 + $0xc0] sm:$0xff]
        %v935 = vld [vmem:[#allocation9 + $0xc8] sm:$0xff]
        %v936 = vld [vmem:[#allocation9 + $0xd0] sm:$0xff]
        %v937 = vld [vmem:[#allocation9 + $0xd8] sm:$0xff]
        %v938 = vld [vmem:[#allocation9 + $0xe0] sm:$0xff]
        %v939 = vld [vmem:[#allocation9 + $0xe8] sm:$0xff]
        %v940 = vld [vmem:[#allocation9 + $0xf0] sm:$0xff]
        %v941 = vld [vmem:[#allocation9 + $0xf8] sm:$0xff]
        %v942 = vld [vmem:[#allocation9 + $0x100] sm:$0xff]
        %v943 = vld [vmem:[#allocation9 + $0x108] sm:$0xff]
        %v944 = vld [vmem:[#allocation9 + $0x110] sm:$0xff]
        %v945 = vld [vmem:[#allocation9 + $0x118] sm:$0xff]
        %v946 = vld [vmem:[#allocation9 + $0x120] sm:$0xff]
        %v947 = vld [vmem:[#allocation9 + $0x128] sm:$0xff]
        %v948 = vld [vmem:[#allocation9 + $0x130] sm:$0xff]
        %v949 = vld [vmem:[#allocation9 + $0x138] sm:$0xff]
        %v950 = vld [vmem:[#allocation9 + $0x140] sm:$0xff]
        %v951 = vld [vmem:[#allocation9 + $0x148] sm:$0xff]
        %v952 = vld [vmem:[#allocation9 + $0x150] sm:$0xff]
        %v953 = vld [vmem:[#allocation9 + $0x158] sm:$0xff]
        %v954 = vld [vmem:[#allocation9 + $0x160] sm:$0xff]
        %v955 = vld [vmem:[#allocation9 + $0x168] sm:$0xff]
        %v956 = vld [vmem:[#allocation9 + $0x170] sm:$0xff]
        %v957 = vld [vmem:[#allocation9 + $0x178] sm:$0xff]
        %v958 = vld [vmem:[#allocation9 + $0x180] sm:$0xff]
        %v959 = vld [vmem:[#allocation9 + $0x188] sm:$0xff]
        %v960 = vld [vmem:[#allocation9 + $0x190] sm:$0xff]
        %v961 = vld [vmem:[#allocation9 + $0x198] sm:$0xff]
        %v962 = vld [vmem:[#allocation9 + $0x1a0] sm:$0xff]
        %v963 = vld [vmem:[#allocation9 + $0x1a8] sm:$0xff]
        %v964 = vld [vmem:[#allocation9 + $0x1b0] sm:$0xff]
        %v965 = vld [vmem:[#allocation9 + $0x1b8] sm:$0xff]
        %v966 = vld [vmem:[#allocation9 + $0x1c0] sm:$0xff]
        %v967 = vld [vmem:[#allocation9 + $0x1c8] sm:$0xff]
        %v968 = vld [vmem:[#allocation9 + $0x1d0] sm:$0xff]
        %v969 = vld [vmem:[#allocation9 + $0x1d8] sm:$0xff]
        %v970 = vld [vmem:[#allocation9 + $0x1e0] sm:$0xff]
        %v971 = vld [vmem:[#allocation9 + $0x1e8] sm:$0xff]
        %v972 = vld [vmem:[#allocation9 + $0x1f0] sm:$0xff]
        %v973 = vld [vmem:[#allocation9 + $0x1f8] sm:$0xff]
        %v974 = vld [vmem:[#allocation9 + $0x200] sm:$0xff]
        %v975 = vld [vmem:[#allocation9 + $0x208] sm:$0xff]
        %v976 = vld [vmem:[#allocation9 + $0x210] sm:$0xff]
        %v977 = vld [vmem:[#allocation9 + $0x218] sm:$0xff]
        %v978 = vld [vmem:[#allocation9 + $0x220] sm:$0xff]
        %v979 = vld [vmem:[#allocation9 + $0x228] sm:$0xff]
        %v980 = vld [vmem:[#allocation9 + $0x230] sm:$0xff]
        %v981 = vld [vmem:[#allocation9 + $0x238] sm:$0xff]
        %v982 = vld [vmem:[#allocation9 + $0x240] sm:$0xff]
        %v983 = vld [vmem:[#allocation9 + $0x248] sm:$0xff]
        %v984 = vld [vmem:[#allocation9 + $0x250] sm:$0xff]
        %v985 = vld [vmem:[#allocation9 + $0x258] sm:$0xff]
        %v986 = vld [vmem:[#allocation9 + $0x260] sm:$0xff]
        %v987 = vld [vmem:[#allocation9 + $0x268] sm:$0xff]
        %v988 = vld [vmem:[#allocation9 + $0x270] sm:$0xff]
        %v989 = vld [vmem:[#allocation9 + $0x278] sm:$0xff]
        %v990 = vld [vmem:[#allocation9 + $0x280] sm:$0xff]
        %v991 = vld [vmem:[#allocation9 + $0x288] sm:$0xff]
        %v992 = vld [vmem:[#allocation9 + $0x290] sm:$0xff]
        %v993 = vld [vmem:[#allocation9 + $0x298] sm:$0xff]
        %v994 = vld [vmem:[#allocation9 + $0x2a0] sm:$0xff]
        %v995 = vld [vmem:[#allocation9 + $0x2a8] sm:$0xff]
        %v996 = vld [vmem:[#allocation9 + $0x2b0] sm:$0xff]
        %v997 = vld [vmem:[#allocation9 + $0x2b8] sm:$0xff]
        %v998 = vld [vmem:[#allocation9 + $0x2c0] sm:$0xff]
        %v999 = vld [vmem:[#allocation9 + $0x2c8] sm:$0xff]
        %v1000 = vld [vmem:[#allocation9 + $0x2d0] sm:$0xff]
        %v1001 = vld [vmem:[#allocation9 + $0x2d8] sm:$0xff]
        %v1002 = vld [vmem:[#allocation9 + $0x2e0] sm:$0xff]
        %v1003 = vld [vmem:[#allocation9 + $0x2e8] sm:$0xff]
        %v1004 = vld [vmem:[#allocation9 + $0x2f0] sm:$0xff]
        %v1005 = vld [vmem:[#allocation9 + $0x2f8] sm:$0xff]
        %v1006 = vld [vmem:[#allocation9 + $0x300] sm:$0xff]
        %v1007 = vld [vmem:[#allocation9 + $0x308] sm:$0xff]
        %v1008 = vld [vmem:[#allocation9 + $0x310] sm:$0xff]
        %v1009 = vld [vmem:[#allocation9 + $0x318] sm:$0xff]
        %v1010 = vld [vmem:[#allocation9 + $0x320] sm:$0xff]
        %v1011 = vld [vmem:[#allocation9 + $0x328] sm:$0xff]
        %v1012 = vld [vmem:[#allocation9 + $0x330] sm:$0xff]
        %v1013 = vld [vmem:[#allocation9 + $0x338] sm:$0xff]
        %v1014 = vld [vmem:[#allocation9 + $0x340] sm:$0xff]
        %v1015 = vld [vmem:[#allocation9 + $0x348] sm:$0xff]
        %v1016 = vld [vmem:[#allocation9 + $0x350] sm:$0xff]
        %v1017 = vld [vmem:[#allocation9 + $0x358] sm:$0xff]
        %v1018 = vld [vmem:[#allocation9 + $0x360] sm:$0xff]
        %v1019 = vld [vmem:[#allocation9 + $0x368] sm:$0xff]
        %v1020 = vld [vmem:[#allocation9 + $0x370] sm:$0xff]
        %v1021 = vld [vmem:[#allocation9 + $0x378] sm:$0xff]
        %v1022 = vld [vmem:[#allocation9 + $0x380] sm:$0xff]
        %v1023 = vld [vmem:[#allocation9 + $0x388] sm:$0xff]
        %v1024 = vld [vmem:[#allocation9 + $0x390] sm:$0xff]
        %v1025 = vld [vmem:[#allocation9 + $0x398] sm:$0xff]
        %v1026 = vld [vmem:[#allocation9 + $0x3a0] sm:$0xff]
        %v1027 = vld [vmem:[#allocation9 + $0x3a8] sm:$0xff]
        %v1028 = vld [vmem:[#allocation9 + $0x3b0] sm:$0xff]
        %v1029 = vld [vmem:[#allocation9 + $0x3b8] sm:$0xff]
        %v1030 = vld [vmem:[#allocation9 + $0x3c0] sm:$0xff]
        %v1031 = vld [vmem:[#allocation9 + $0x3c8] sm:$0xff]
        %v1032 = vld [vmem:[#allocation9 + $0x3d0] sm:$0xff]
        %v1033 = vld [vmem:[#allocation9 + $0x3d8] sm:$0xff]
        %v1034 = vld [vmem:[#allocation9 + $0x3e0] sm:$0xff]
        %v1035 = vld [vmem:[#allocation9 + $0x3e8] sm:$0xff]
        %v1036 = vld [vmem:[#allocation9 + $0x3f0] sm:$0xff]
        %v1037 = vld [vmem:[#allocation9 + $0x3f8] sm:$0xff]
        %v1038 = vld [vmem:[#allocation9 + $0x400] sm:$0xff]
        %v1039 = vld [vmem:[#allocation9 + $0x408] sm:$0xff]
        %v1040 = vld [vmem:[#allocation9 + $0x410] sm:$0xff]
        %v1041 = vld [vmem:[#allocation9 + $0x418] sm:$0xff]
        %v1042 = vld [vmem:[#allocation9 + $0x420] sm:$0xff]
        %v1043 = vld [vmem:[#allocation9 + $0x428] sm:$0xff]
        %v1044 = vld [vmem:[#allocation9 + $0x430] sm:$0xff]
        %v1045 = vld [vmem:[#allocation9 + $0x438] sm:$0xff]
        %v1046 = vld [vmem:[#allocation9 + $0x440] sm:$0xff]
        %v1047 = vld [vmem:[#allocation9 + $0x448] sm:$0xff]
        %v1048 = vld [vmem:[#allocation9 + $0x450] sm:$0xff]
        %v1049 = vld [vmem:[#allocation9 + $0x458] sm:$0xff]
        %v1050 = vld [vmem:[#allocation9 + $0x460] sm:$0xff]
        %v1051 = vld [vmem:[#allocation9 + $0x468] sm:$0xff]
        %v1052 = vld [vmem:[#allocation9 + $0x470] sm:$0xff]
        %v1053 = vld [vmem:[#allocation9 + $0x478] sm:$0xff]
        %v1054 = vld [vmem:[#allocation9 + $0x480] sm:$0xff]
        %v1055 = vld [vmem:[#allocation9 + $0x488] sm:$0xff]
        %v1056 = vld [vmem:[#allocation9 + $0x490] sm:$0xff]
        %v1057 = vld [vmem:[#allocation9 + $0x498] sm:$0xff]
        %v1058 = vld [vmem:[#allocation9 + $0x4a0] sm:$0xff]
        %v1059 = vld [vmem:[#allocation9 + $0x4a8] sm:$0xff]
        %v1060 = vld [vmem:[#allocation9 + $0x4b0] sm:$0xff]
        %v1061 = vld [vmem:[#allocation9 + $0x4b8] sm:$0xff]
        %v1062 = vld [vmem:[#allocation9 + $0x4c0] sm:$0xff]
        %v1063 = vld [vmem:[#allocation9 + $0x4c8] sm:$0xff]
        %v1064 = vld [vmem:[#allocation9 + $0x4d0] sm:$0xff]
        %v1065 = vld [vmem:[#allocation9 + $0x4d8] sm:$0xff]
        %v1066 = vld [vmem:[#allocation9 + $0x4e0] sm:$0xff]
        %v1067 = vld [vmem:[#allocation9 + $0x4e8] sm:$0xff]
        %v1068 = vld [vmem:[#allocation9 + $0x4f0] sm:$0xff]
        %v1069 = vld [vmem:[#allocation9 + $0x4f8] sm:$0xff]
        %v1070 = vld [vmem:[#allocation9 + $0x500] sm:$0xff]
        %v1071 = vld [vmem:[#allocation9 + $0x508] sm:$0xff]
        %v1072 = vld [vmem:[#allocation9 + $0x510] sm:$0xff]
        %v1073 = vld [vmem:[#allocation9 + $0x518] sm:$0xff]
        %v1074 = vld [vmem:[#allocation9 + $0x520] sm:$0xff]
        %v1075 = vld [vmem:[#allocation9 + $0x528] sm:$0xff]
        %v1076 = vld [vmem:[#allocation9 + $0x530] sm:$0xff]
        %v1077 = vld [vmem:[#allocation9 + $0x538] sm:$0xff]
        %v1078 = vld [vmem:[#allocation9 + $0x540] sm:$0xff]
        %v1079 = vld [vmem:[#allocation9 + $0x548] sm:$0xff]
        %v1080 = vld [vmem:[#allocation9 + $0x550] sm:$0xff]
        %v1081 = vld [vmem:[#allocation9 + $0x558] sm:$0xff]
        %v1082 = vld [vmem:[#allocation9 + $0x560] sm:$0xff]
        %v1083 = vld [vmem:[#allocation9 + $0x568] sm:$0xff]
        %v1084 = vld [vmem:[#allocation9 + $0x570] sm:$0xff]
        %v1085 = vld [vmem:[#allocation9 + $0x578] sm:$0xff]
        %v1086 = vld [vmem:[#allocation9 + $0x580] sm:$0xff]
        %v1087 = vld [vmem:[#allocation9 + $0x588] sm:$0xff]
        %v1088 = vld [vmem:[#allocation9 + $0x590] sm:$0xff]
        %v1089 = vld [vmem:[#allocation9 + $0x598] sm:$0xff]
        %v1090 = vld [vmem:[#allocation9 + $0x5a0] sm:$0xff]
        %v1091 = vld [vmem:[#allocation9 + $0x5a8] sm:$0xff]
        %v1092 = vld [vmem:[#allocation9 + $0x5b0] sm:$0xff]
        %v1093 = vld [vmem:[#allocation9 + $0x5b8] sm:$0xff]
        %v1094 = vld [vmem:[#allocation9 + $0x5c0] sm:$0xff]
        %v1095 = vld [vmem:[#allocation9 + $0x5c8] sm:$0xff]
        %v1096 = vld [vmem:[#allocation9 + $0x5d0] sm:$0xff]
        %v1097 = vld [vmem:[#allocation9 + $0x5d8] sm:$0xff]
        %v1098 = vld [vmem:[#allocation9 + $0x5e0] sm:$0xff]
        %v1099 = vld [vmem:[#allocation9 + $0x5e8] sm:$0xff]
        %v1100 = vld [vmem:[#allocation9 + $0x5f0] sm:$0xff]
        %v1101 = vld [vmem:[#allocation9 + $0x5f8] sm:$0xff]
        %v1102 = vld [vmem:[#allocation9 + $0x600] sm:$0xff]
        %v1103 = vld [vmem:[#allocation9 + $0x608] sm:$0xff]
        %v1104 = vld [vmem:[#allocation9 + $0x610] sm:$0xff]
        %v1105 = vld [vmem:[#allocation9 + $0x618] sm:$0xff]
        %v1106 = vld [vmem:[#allocation9 + $0x620] sm:$0xff]
        %v1107 = vld [vmem:[#allocation9 + $0x628] sm:$0xff]
        %v1108 = vld [vmem:[#allocation9 + $0x630] sm:$0xff]
        %v1109 = vld [vmem:[#allocation9 + $0x638] sm:$0xff]
        %v1110 = vld [vmem:[#allocation9 + $0x640] sm:$0xff]
        %v1111 = vld [vmem:[#allocation9 + $0x648] sm:$0xff]
        %v1112 = vld [vmem:[#allocation9 + $0x650] sm:$0xff]
        %v1113 = vld [vmem:[#allocation9 + $0x658] sm:$0xff]
        %v1114 = vld [vmem:[#allocation9 + $0x660] sm:$0xff]
        %v1115 = vld [vmem:[#allocation9 + $0x668] sm:$0xff]
        %v1116 = vld [vmem:[#allocation9 + $0x670] sm:$0xff]
        %v1117 = vld [vmem:[#allocation9 + $0x678] sm:$0xff]
        %v1118 = vld [vmem:[#allocation9 + $0x680] sm:$0xff]
        %v1119 = vld [vmem:[#allocation9 + $0x688] sm:$0xff]
        %v1120 = vld [vmem:[#allocation9 + $0x690] sm:$0xff]
        %v1121 = vld [vmem:[#allocation9 + $0x698] sm:$0xff]
        %v1122 = vld [vmem:[#allocation9 + $0x6a0] sm:$0xff]
        %v1123 = vld [vmem:[#allocation9 + $0x6a8] sm:$0xff]
        %v1124 = vld [vmem:[#allocation9 + $0x6b0] sm:$0xff]
        %v1125 = vld [vmem:[#allocation9 + $0x6b8] sm:$0xff]
        %v1126 = vld [vmem:[#allocation9 + $0x6c0] sm:$0xff]
        %v1127 = vld [vmem:[#allocation9 + $0x6c8] sm:$0xff]
        %v1128 = vld [vmem:[#allocation9 + $0x6d0] sm:$0xff]
        %v1129 = vld [vmem:[#allocation9 + $0x6d8] sm:$0xff]
        %v1130 = vld [vmem:[#allocation9 + $0x6e0] sm:$0xff]
        %v1131 = vld [vmem:[#allocation9 + $0x6e8] sm:$0xff]
        %v1132 = vld [vmem:[#allocation9 + $0x6f0] sm:$0xff]
        %v1133 = vld [vmem:[#allocation9 + $0x6f8] sm:$0xff]
        %v1134 = vld [vmem:[#allocation9 + $0x700] sm:$0xff]
        %v1135 = vld [vmem:[#allocation9 + $0x708] sm:$0xff]
        %v1136 = vld [vmem:[#allocation9 + $0x710] sm:$0xff]
        %v1137 = vld [vmem:[#allocation9 + $0x718] sm:$0xff]
        %v1138 = vld [vmem:[#allocation9 + $0x720] sm:$0xff]
        %v1139 = vld [vmem:[#allocation9 + $0x728] sm:$0xff]
        %v1140 = vld [vmem:[#allocation9 + $0x730] sm:$0xff]
        %v1141 = vld [vmem:[#allocation9 + $0x738] sm:$0xff]
        %v1142 = vld [vmem:[#allocation9 + $0x740] sm:$0xff]
        %v1143 = vld [vmem:[#allocation9 + $0x748] sm:$0xff]
        %v1144 = vld [vmem:[#allocation9 + $0x750] sm:$0xff]
        %v1145 = vld [vmem:[#allocation9 + $0x758] sm:$0xff]
        %v1146 = vld [vmem:[#allocation9 + $0x760] sm:$0xff]
        %v1147 = vld [vmem:[#allocation9 + $0x768] sm:$0xff]
        %v1148 = vld [vmem:[#allocation9 + $0x770] sm:$0xff]
        %v1149 = vld [vmem:[#allocation9 + $0x778] sm:$0xff]
        %v1150 = vld [vmem:[#allocation9 + $0x780] sm:$0xff]
        %v1151 = vld [vmem:[#allocation9 + $0x788] sm:$0xff]
        %v1152 = vld [vmem:[#allocation9 + $0x790] sm:$0xff]
        %v1153 = vld [vmem:[#allocation9 + $0x798] sm:$0xff]
        %v1154 = vld [vmem:[#allocation9 + $0x7a0] sm:$0xff]
        %v1155 = vld [vmem:[#allocation9 + $0x7a8] sm:$0xff]
        %v1156 = vld [vmem:[#allocation9 + $0x7b0] sm:$0xff]
        %v1157 = vld [vmem:[#allocation9 + $0x7b8] sm:$0xff]
        %v1158 = vld [vmem:[#allocation9 + $0x7c0] sm:$0xff]
        %v1159 = vld [vmem:[#allocation9 + $0x7c8] sm:$0xff]
        %v1160 = vld [vmem:[#allocation9 + $0x7d0] sm:$0xff]
        %v1161 = vld [vmem:[#allocation9 + $0x7d8] sm:$0xff]
        %v1162 = vld [vmem:[#allocation9 + $0x7e0] sm:$0xff]
        %v1163 = vld [vmem:[#allocation9 + $0x7e8] sm:$0xff]
        %v1164 = vld [vmem:[#allocation9 + $0x7f0] sm:$0xff]
        %v1165 = vld [vmem:[#allocation9 + $0x7f8] sm:$0xff]
        %v1166 = vld [vmem:[#allocation9 + $0x800] sm:$0xff]
        %v1167 = vld [vmem:[#allocation9 + $0x808] sm:$0xff]
        %v1168 = vld [vmem:[#allocation9 + $0x810] sm:$0xff]
        %v1169 = vld [vmem:[#allocation9 + $0x818] sm:$0xff]
        %v1170 = vld [vmem:[#allocation9 + $0x820] sm:$0xff]
        %v1171 = vld [vmem:[#allocation9 + $0x828] sm:$0xff]
        %v1172 = vld [vmem:[#allocation9 + $0x830] sm:$0xff]
        %v1173 = vld [vmem:[#allocation9 + $0x838] sm:$0xff]
        %v1174 = vld [vmem:[#allocation9 + $0x840] sm:$0xff]
        %v1175 = vld [vmem:[#allocation9 + $0x848] sm:$0xff]
        %v1176 = vld [vmem:[#allocation9 + $0x850] sm:$0xff]
        %v1177 = vld [vmem:[#allocation9 + $0x858] sm:$0xff]
        %v1178 = vld [vmem:[#allocation9 + $0x860] sm:$0xff]
        %v1179 = vld [vmem:[#allocation9 + $0x868] sm:$0xff]
        %v1180 = vld [vmem:[#allocation9 + $0x870] sm:$0xff]
        %v1181 = vld [vmem:[#allocation9 + $0x878] sm:$0xff]
        %v1182 = vld [vmem:[#allocation9 + $0x880] sm:$0xff]
        %v1183 = vld [vmem:[#allocation9 + $0x888] sm:$0xff]
        %v1184 = vld [vmem:[#allocation9 + $0x890] sm:$0xff]
        %v1185 = vld [vmem:[#allocation9 + $0x898] sm:$0xff]
        %v1186 = vld [vmem:[#allocation9 + $0x8a0] sm:$0xff]
        %v1187 = vld [vmem:[#allocation9 + $0x8a8] sm:$0xff]
        %v1188 = vld [vmem:[#allocation9 + $0x8b0] sm:$0xff]
        %v1189 = vld [vmem:[#allocation9 + $0x8b8] sm:$0xff]
        %v1190 = vld [vmem:[#allocation9 + $0x8c0] sm:$0xff]
        %v1191 = vld [vmem:[#allocation9 + $0x8c8] sm:$0xff]
        %v1192 = vld [vmem:[#allocation9 + $0x8d0] sm:$0xff]
        %v1193 = vld [vmem:[#allocation9 + $0x8d8] sm:$0xff]
        %v1194 = vld [vmem:[#allocation9 + $0x8e0] sm:$0xff]
        %v1195 = vld [vmem:[#allocation9 + $0x8e8] sm:$0xff]
        %v1196 = vld [vmem:[#allocation9 + $0x8f0] sm:$0xff]
        %v1197 = vld [vmem:[#allocation9 + $0x8f8] sm:$0xff]
        %v1198 = vld [vmem:[#allocation9 + $0x900] sm:$0xff]
        %v1199 = vld [vmem:[#allocation9 + $0x908] sm:$0xff]
        %v1200 = vld [vmem:[#allocation9 + $0x910] sm:$0xff]
        %v1201 = vld [vmem:[#allocation9 + $0x918] sm:$0xff]
        %v1202 = vld [vmem:[#allocation9 + $0x920] sm:$0xff]
        %v1203 = vld [vmem:[#allocation9 + $0x928] sm:$0xff]
        %v1204 = vld [vmem:[#allocation9 + $0x930] sm:$0xff]
        %v1205 = vld [vmem:[#allocation9 + $0x938] sm:$0xff]
        %v1206 = vld [vmem:[#allocation9 + $0x940] sm:$0xff]
        %v1207 = vld [vmem:[#allocation9 + $0x948] sm:$0xff]
        %v1208 = vld [vmem:[#allocation9 + $0x950] sm:$0xff]
        %v1209 = vld [vmem:[#allocation9 + $0x958] sm:$0xff]
        %v1210 = vld [vmem:[#allocation9 + $0x960] sm:$0xff]
        %v1211 = vld [vmem:[#allocation9 + $0x968] sm:$0xff]
        %v1212 = vld [vmem:[#allocation9 + $0x970] sm:$0xff]
        %v1213 = vld [vmem:[#allocation9 + $0x978] sm:$0xff]
        %v1214 = vld [vmem:[#allocation9 + $0x980] sm:$0xff]
        %v1215 = vld [vmem:[#allocation9 + $0x988] sm:$0xff]
        %v1216 = vld [vmem:[#allocation9 + $0x990] sm:$0xff]
        %v1217 = vld [vmem:[#allocation9 + $0x998] sm:$0xff]
        %v1218 = vld [vmem:[#allocation9 + $0x9a0] sm:$0xff]
        %v1219 = vld [vmem:[#allocation9 + $0x9a8] sm:$0xff]
        %v1220 = vld [vmem:[#allocation9 + $0x9b0] sm:$0xff]
        %v1221 = vld [vmem:[#allocation9 + $0x9b8] sm:$0xff]
        %v1222 = vld [vmem:[#allocation9 + $0x9c0] sm:$0xff]
        %v1223 = vld [vmem:[#allocation9 + $0x9c8] sm:$0xff]
        %v1224 = vld [vmem:[#allocation9 + $0x9d0] sm:$0xff]
        %v1225 = vld [vmem:[#allocation9 + $0x9d8] sm:$0xff]
        %v1226 = vld [vmem:[#allocation9 + $0x9e0] sm:$0xff]
        %v1227 = vld [vmem:[#allocation9 + $0x9e8] sm:$0xff]
        %v1228 = vld [vmem:[#allocation9 + $0x9f0] sm:$0xff]
        %v1229 = vld [vmem:[#allocation9 + $0x9f8] sm:$0xff]
        %v1230 = vld [vmem:[#allocation9 + $0xa00] sm:$0xff]
        %v1231 = vld [vmem:[#allocation9 + $0xa08] sm:$0xff]
        %v1232 = vld [vmem:[#allocation9 + $0xa10] sm:$0xff]
        %v1233 = vld [vmem:[#allocation9 + $0xa18] sm:$0xff]
        %v1234 = vld [vmem:[#allocation9 + $0xa20] sm:$0xff]
        %v1235 = vld [vmem:[#allocation9 + $0xa28] sm:$0xff]
        %v1236 = vld [vmem:[#allocation9 + $0xa30] sm:$0xff]
        %v1237 = vld [vmem:[#allocation9 + $0xa38] sm:$0xff]
        %v1238 = vld [vmem:[#allocation9 + $0xa40] sm:$0xff]
        %v1239 = vld [vmem:[#allocation9 + $0xa48] sm:$0xff]
        %v1240 = vld [vmem:[#allocation9 + $0xa50] sm:$0xff]
        %v1241 = vld [vmem:[#allocation9 + $0xa58] sm:$0xff]
        %v1242 = vld [vmem:[#allocation9 + $0xa60] sm:$0xff]
        %v1243 = vld [vmem:[#allocation9 + $0xa68] sm:$0xff]
        %v1244 = vld [vmem:[#allocation9 + $0xa70] sm:$0xff]
        %v1245 = vld [vmem:[#allocation9 + $0xa78] sm:$0xff]
        %v1246 = vld [vmem:[#allocation9 + $0xa80] sm:$0xff]
        %v1247 = vld [vmem:[#allocation9 + $0xa88] sm:$0xff]
        %v1248 = vld [vmem:[#allocation9 + $0xa90] sm:$0xff]
        %v1249 = vld [vmem:[#allocation9 + $0xa98] sm:$0xff]
        %v1250 = vld [vmem:[#allocation9 + $0xaa0] sm:$0xff]
        %v1251 = vld [vmem:[#allocation9 + $0xaa8] sm:$0xff]
        %v1252 = vld [vmem:[#allocation9 + $0xab0] sm:$0xff]
        %v1253 = vld [vmem:[#allocation9 + $0xab8] sm:$0xff]
        %v1254 = vld [vmem:[#allocation9 + $0xac0] sm:$0xff]
        %v1255 = vld [vmem:[#allocation9 + $0xac8] sm:$0xff]
        %v1256 = vld [vmem:[#allocation9 + $0xad0] sm:$0xff]
        %v1257 = vld [vmem:[#allocation9 + $0xad8] sm:$0xff]
        %v1258 = vld [vmem:[#allocation9 + $0xae0] sm:$0xff]
        %v1259 = vld [vmem:[#allocation9 + $0xae8] sm:$0xff]
        %v1260 = vld [vmem:[#allocation9 + $0xaf0] sm:$0xff]
        %v1261 = vld [vmem:[#allocation9 + $0xaf8] sm:$0xff]
        %v1262 = vld [vmem:[#allocation9 + $0xb00] sm:$0xff]
        %v1263 = vld [vmem:[#allocation9 + $0xb08] sm:$0xff]
        %v1264 = vld [vmem:[#allocation9 + $0xb10] sm:$0xff]
        %v1265 = vld [vmem:[#allocation9 + $0xb18] sm:$0xff]
        %v1266 = vld [vmem:[#allocation9 + $0xb20] sm:$0xff]
        %v1267 = vld [vmem:[#allocation9 + $0xb28] sm:$0xff]
        %v1268 = vld [vmem:[#allocation9 + $0xb30] sm:$0xff]
        %v1269 = vld [vmem:[#allocation9 + $0xb38] sm:$0xff]
        %v1270 = vld [vmem:[#allocation9 + $0xb40] sm:$0xff]
        %v1271 = vld [vmem:[#allocation9 + $0xb48] sm:$0xff]
        %v1272 = vld [vmem:[#allocation9 + $0xb50] sm:$0xff]
        %v1273 = vld [vmem:[#allocation9 + $0xb58] sm:$0xff]
        %v1274 = vld [vmem:[#allocation9 + $0xb60] sm:$0xff]
        %v1275 = vld [vmem:[#allocation9 + $0xb68] sm:$0xff]
        %v1276 = vld [vmem:[#allocation9 + $0xb70] sm:$0xff]
        %v1277 = vld [vmem:[#allocation9 + $0xb78] sm:$0xff]
        %v1278 = vld [vmem:[#allocation9 + $0xb80] sm:$0xff]
        %v1279 = vld [vmem:[#allocation9 + $0xb88] sm:$0xff]
        %v1280 = vld [vmem:[#allocation9 + $0xb90] sm:$0xff]
        %v1281 = vld [vmem:[#allocation9 + $0xb98] sm:$0xff]
        %v1282 = vld [vmem:[#allocation9 + $0xba0] sm:$0xff]
        %v1283 = vld [vmem:[#allocation9 + $0xba8] sm:$0xff]
        %v1284 = vld [vmem:[#allocation9 + $0xbb0] sm:$0xff]
        %v1285 = vld [vmem:[#allocation9 + $0xbb8] sm:$0xff]
        %v1286 = vld [vmem:[#allocation9 + $0xbc0] sm:$0xff]
        %v1287 = vld [vmem:[#allocation9 + $0xbc8] sm:$0xff]
        %v1288 = vld [vmem:[#allocation9 + $0xbd0] sm:$0xff]
        %v1289 = vld [vmem:[#allocation9 + $0xbd8] sm:$0xff]
        %v1290 = vld [vmem:[#allocation9 + $0xbe0] sm:$0xff]
        %v1291 = vld [vmem:[#allocation9 + $0xbe8] sm:$0xff]
        %v1292 = vld [vmem:[#allocation9 + $0xbf0] sm:$0xff]
        %v1293 = vld [vmem:[#allocation9 + $0xbf8] sm:$0xff]
        %v1294 = vld [vmem:[#allocation9 + $0xc00] sm:$0xff]
        %v1295 = vld [vmem:[#allocation9 + $0xc08] sm:$0xff]
        %v1296 = vld [vmem:[#allocation9 + $0xc10] sm:$0xff]
        %v1297 = vld [vmem:[#allocation9 + $0xc18] sm:$0xff]
        %v1298 = vld [vmem:[#allocation9 + $0xc20] sm:$0xff]
        %v1299 = vld [vmem:[#allocation9 + $0xc28] sm:$0xff]
        %v1300 = vld [vmem:[#allocation9 + $0xc30] sm:$0xff]
        %v1301 = vld [vmem:[#allocation9 + $0xc38] sm:$0xff]
        %v1302 = vld [vmem:[#allocation9 + $0xc40] sm:$0xff]
        %v1303 = vld [vmem:[#allocation9 + $0xc48] sm:$0xff]
        %v1304 = vld [vmem:[#allocation9 + $0xc50] sm:$0xff]
        %v1305 = vld [vmem:[#allocation9 + $0xc58] sm:$0xff]
        %v1306 = vld [vmem:[#allocation9 + $0xc60] sm:$0xff]
        %v1307 = vld [vmem:[#allocation9 + $0xc68] sm:$0xff]
        %v1308 = vld [vmem:[#allocation9 + $0xc70] sm:$0xff]
        %v1309 = vld [vmem:[#allocation9 + $0xc78] sm:$0xff]
        %v1310 = vld [vmem:[#allocation9 + $0xc80] sm:$0xff]
        %v1311 = vld [vmem:[#allocation9 + $0xc88] sm:$0xff]
        %v1312 = vld [vmem:[#allocation9 + $0xc90] sm:$0x3f]
        %v1313 = vld [vmem:[#allocation9 + $0xc98] sm:$0x3f]
        %v1314 = vld [vmem:[#allocation9 + $0xca0] sm:$0x3f]
        %v1315 = vld [vmem:[#allocation9 + $0xca8] sm:$0x3f]
        %v1316 = vld [vmem:[#allocation9 + $0xcb0] sm:$0x3f]
        %v1317 = vld [vmem:[#allocation9 + $0xcb8] sm:$0x3f]
        %vm1318 = vcmask 244736
        %v1320 = vsel %vm1318, %v904, 0
        %v1323 = vsel %vm1318, %v909, 0
        %vm1325 = vcmask 1045504
        %v1327 = vsel %vm1325, %v1312, 0
        %v1330 = vsel %vm1325, %v1313, 0
        %v1333 = vsel %vm1325, %v1314, 0
        %v1336 = vsel %vm1325, %v1315, 0
        %v1339 = vsel %vm1325, %v1316, 0
        %v1342 = vsel %vm1325, %v1317, 0
        %1344 = vmatprep.subr.mxu0 %v1001
        %1345 = vmatpush1.msra.mxu0 %v1000
        %1346 = vmatprep.subr.mxu0 %v995
        %1347 = vmatpush1.msra.mxu0 %v994
        %1348 = vmatprep.subr.mxu0 %v989
        %1349 = vmatpush1.msra.mxu0 %v988
        %1350 = vmatprep.subr.mxu0 %v983
        %1351 = vmatpush1.msra.mxu0 %v982
        %1352 = vmatprep.subr.mxu0 %v977
        %1353 = vmatpush1.msra.mxu0 %v976
        %1354 = vmatprep.subr.mxu0 %v971
        %1355 = vmatpush1.msra.mxu0 %v970
        %1356 = vmatprep.subr.mxu0 %v965
        %1357 = vmatpush1.msra.mxu0 %v964
        %1358 = vmatprep.subr.mxu0 %v959
        %1359 = vmatpush1.msra.mxu0 %v958
        %1360 = vmatprep.subr.mxu0 %v953
        %1361 = vmatpush1.msra.mxu0 %v952
        %1362 = vmatprep.subr.mxu0 %v947
        %1363 = vmatpush1.msra.mxu0 %v946
        %1364 = vmatprep.subr.mxu0 %v941
        %1365 = vmatpush1.msra.mxu0 %v940
        %1366 = vmatprep.subr.mxu0 %v935
        %1367 = vmatpush1.msra.mxu0 %v934
        %1368 = vmatprep.subr.mxu0 %v929
        %1369 = vmatpush1.msra.mxu0 %v928
        %1370 = vmatprep.subr.mxu0 %v923
        %1371 = vmatpush1.msra.mxu0 %v922
        %1372 = vmatprep.subr.mxu0 %v917
        %1373 = vmatpush1.msra.mxu0 %v916
        %1374 = vmatprep.subr.mxu0 %v911
        %1375 = vmatpush1.msra.mxu0 %v910
        %1376 = vmatprep.subr.mxu0 %v1097
        %1377 = vmatpush2.msra.mxu0 %v1096
        %1378 = vmatprep.subr.mxu0 %v1091
        %1379 = vmatpush2.msra.mxu0 %v1090
        %1380 = vmatprep.subr.mxu0 %v1085
        %1381 = vmatpush2.msra.mxu0 %v1084
        %1382 = vmatprep.subr.mxu0 %v1079
        %1383 = vmatpush2.msra.mxu0 %v1078
        %1384 = vmatprep.subr.mxu0 %v1073
        %1385 = vmatpush2.msra.mxu0 %v1072
        %1386 = vmatprep.subr.mxu0 %v1067
        %1387 = vmatpush2.msra.mxu0 %v1066
        %1388 = vmatprep.subr.mxu0 %v1061
        %1389 = vmatpush2.msra.mxu0 %v1060
        %1390 = vmatprep.subr.mxu0 %v1055
        %1391 = vmatpush2.msra.mxu0 %v1054
        %1392 = vmatprep.subr.mxu0 %v1049
        %1393 = vmatpush2.msra.mxu0 %v1048
        %1394 = vmatprep.subr.mxu0 %v1043
        %1395 = vmatpush2.msra.mxu0 %v1042
        %1396 = vmatprep.subr.mxu0 %v1037
        %1397 = vmatpush2.msra.mxu0 %v1036
        %1398 = vmatprep.subr.mxu0 %v1031
        %1399 = vmatpush2.msra.mxu0 %v1030
        %1400 = vmatprep.subr.mxu0 %v1025
        %1401 = vmatpush2.msra.mxu0 %v1024
        %1402 = vmatprep.subr.mxu0 %v1019
        %1403 = vmatpush2.msra.mxu0 %v1018
        %1404 = vmatprep.subr.mxu0 %v1013
        %1405 = vmatpush2.msra.mxu0 %v1012
        %1406 = vmatprep.subr.mxu0 %v1007
        %1407 = vmatpush2.msra.mxu0 %v1006
        %1408 = vmatprep.mubr.f32.mxu0 %v901
        %1409 = vmatmul.mubr.f32.gmra.mxu0 %v900
        %v1410 = vpop.f32.mrf.mxu0
        %v1411 = vadd.f32 0.0, %v1410
        %v1412 = vpop.f32.mrf.mxu0
        %v1413 = vadd.f32 0.0, %v1412
        %1414 = vmatprep.mubr.f32.mxu0 %v906
        %1415 = vmatmul.mubr.f32.gmra.mxu0 %v905
        %v1416 = vpop.f32.mrf.mxu0
        %v1417 = vadd.f32 0.0, %v1416
        %v1418 = vpop.f32.mrf.mxu0
        %v1419 = vadd.f32 0.0, %v1418
        %1420 = vdwg.mxu0
        %1421 = vmatprep.subr.mxu0 %v1193
        %1422 = vmatpush1.msra.mxu0 %v1192
        %1423 = vmatprep.subr.mxu0 %v1187
        %1424 = vmatpush1.msra.mxu0 %v1186
        %1425 = vmatprep.subr.mxu0 %v1181
        %1426 = vmatpush1.msra.mxu0 %v1180
        %1427 = vmatprep.subr.mxu0 %v1175
        %1428 = vmatpush1.msra.mxu0 %v1174
        %1429 = vmatprep.subr.mxu0 %v1169
        %1430 = vmatpush1.msra.mxu0 %v1168
        %1431 = vmatprep.subr.mxu0 %v1163
        %1432 = vmatpush1.msra.mxu0 %v1162
        %1433 = vmatprep.subr.mxu0 %v1157
        %1434 = vmatpush1.msra.mxu0 %v1156
        %1435 = vmatprep.subr.mxu0 %v1151
        %1436 = vmatpush1.msra.mxu0 %v1150
        %1437 = vmatprep.subr.mxu0 %v1145
        %1438 = vmatpush1.msra.mxu0 %v1144
        %1439 = vmatprep.subr.mxu0 %v1139
        %1440 = vmatpush1.msra.mxu0 %v1138
        %1441 = vmatprep.subr.mxu0 %v1133
        %1442 = vmatpush1.msra.mxu0 %v1132
        %1443 = vmatprep.subr.mxu0 %v1127
        %1444 = vmatpush1.msra.mxu0 %v1126
        %1445 = vmatprep.subr.mxu0 %v1121
        %1446 = vmatpush1.msra.mxu0 %v1120
        %1447 = vmatprep.subr.mxu0 %v1115
        %1448 = vmatpush1.msra.mxu0 %v1114
        %1449 = vmatprep.subr.mxu0 %v1109
        %1450 = vmatpush1.msra.mxu0 %v1108
        %1451 = vmatprep.subr.mxu0 %v1103
        %1452 = vmatpush1.msra.mxu0 %v1102
        %1453 = vmatprep.subr.mxu0 %v1289
        %1454 = vmatpush2.msra.mxu0 %v1288
        %1455 = vmatprep.subr.mxu0 %v1283
        %1456 = vmatpush2.msra.mxu0 %v1282
        %1457 = vmatprep.subr.mxu0 %v1277
        %1458 = vmatpush2.msra.mxu0 %v1276
        %1459 = vmatprep.subr.mxu0 %v1271
        %1460 = vmatpush2.msra.mxu0 %v1270
        %1461 = vmatprep.subr.mxu0 %v1265
        %1462 = vmatpush2.msra.mxu0 %v1264
        %1463 = vmatprep.subr.mxu0 %v1259
        %1464 = vmatpush2.msra.mxu0 %v1258
        %1465 = vmatprep.subr.mxu0 %v1253
        %1466 = vmatpush2.msra.mxu0 %v1252
        %1467 = vmatprep.subr.mxu0 %v1247
        %1468 = vmatpush2.msra.mxu0 %v1246
        %1469 = vmatprep.subr.mxu0 %v1241
        %1470 = vmatpush2.msra.mxu0 %v1240
        %1471 = vmatprep.subr.mxu0 %v1235
        %1472 = vmatpush2.msra.mxu0 %v1234
        %1473 = vmatprep.subr.mxu0 %v1229
        %1474 = vmatpush2.msra.mxu0 %v1228
        %1475 = vmatprep.subr.mxu0 %v1223
        %1476 = vmatpush2.msra.mxu0 %v1222
        %1477 = vmatprep.subr.mxu0 %v1217
        %1478 = vmatpush2.msra.mxu0 %v1216
        %1479 = vmatprep.subr.mxu0 %v1211
        %1480 = vmatpush2.msra.mxu0 %v1210
        %1481 = vmatprep.subr.mxu0 %v1205
        %1482 = vmatpush2.msra.mxu0 %v1204
        %1483 = vmatprep.subr.mxu0 %v1199
        %1484 = vmatpush2.msra.mxu0 %v1198
        %1485 = vmatprep.mubr.f32.mxu0 %v903
        %1486 = vmatmul.mubr.f32.gmra.mxu0 %v902
        %v1487 = vpop.f32.mrf.mxu0
        %v1488 = vadd.f32 %v1411, %v1487
        %v1489 = vpop.f32.mrf.mxu0
        %v1490 = vadd.f32 %v1413, %v1489
        %1491 = vmatprep.mubr.f32.mxu0 %v908
        %1492 = vmatmul.mubr.f32.gmra.mxu0 %v907
        %v1493 = vpop.f32.mrf.mxu0
        %v1494 = vadd.f32 %v1417, %v1493
        %v1495 = vpop.f32.mrf.mxu0
        %v1496 = vadd.f32 %v1419, %v1495
        %1497 = vdwg.mxu0
        %1498 = vmatprep.subr.mxu0 0.0
        %1499 = vmatpush1.msra.mxu0 0.0
        %1500 = vmatprep.subr.mxu0 0.0
        %1501 = vmatpush1.msra.mxu0 0.0
        %1502 = vmatprep.subr.mxu0 0.0
        %1503 = vmatpush1.msra.mxu0 0.0
        %1504 = vmatprep.subr.mxu0 0.0
        %1505 = vmatpush1.msra.mxu0 0.0
        %1506 = vmatprep.subr.mxu0 0.0
        %1507 = vmatpush1.msra.mxu0 0.0
        %1508 = vmatprep.subr.mxu0 0.0
        %1509 = vmatpush1.msra.mxu0 0.0
        %1510 = vmatprep.subr.mxu0 0.0
        %1511 = vmatpush1.msra.mxu0 0.0
        %1512 = vmatprep.subr.mxu0 0.0
        %1513 = vmatpush1.msra.mxu0 0.0
        %1514 = vmatprep.subr.mxu0 0.0
        %1515 = vmatpush1.msra.mxu0 0.0
        %1516 = vmatprep.subr.mxu0 0.0
        %1517 = vmatpush1.msra.mxu0 0.0
        %1518 = vmatprep.subr.mxu0 0.0
        %1519 = vmatpush1.msra.mxu0 0.0
        %1520 = vmatprep.subr.mxu0 0.0
        %1521 = vmatpush1.msra.mxu0 0.0
        %1522 = vmatprep.subr.mxu0 %v1330
        %1523 = vmatpush1.msra.mxu0 %v1327
        %1524 = vmatprep.subr.mxu0 %v1307
        %1525 = vmatpush1.msra.mxu0 %v1306
        %1526 = vmatprep.subr.mxu0 %v1301
        %1527 = vmatpush1.msra.mxu0 %v1300
        %1528 = vmatprep.subr.mxu0 %v1295
        %1529 = vmatpush1.msra.mxu0 %v1294
        %1530 = vmatprep.subr.mxu0 0.0
        %1531 = vmatpush2.msra.mxu0 0.0
        %1532 = vmatprep.subr.mxu0 0.0
        %1533 = vmatpush2.msra.mxu0 0.0
        %1534 = vmatprep.subr.mxu0 0.0
        %1535 = vmatpush2.msra.mxu0 0.0
        %1536 = vmatprep.subr.mxu0 0.0
        %1537 = vmatpush2.msra.mxu0 0.0
        %1538 = vmatprep.subr.mxu0 0.0
        %1539 = vmatpush2.msra.mxu0 0.0
        %1540 = vmatprep.subr.mxu0 0.0
        %1541 = vmatpush2.msra.mxu0 0.0
        %1542 = vmatprep.subr.mxu0 0.0
        %1543 = vmatpush2.msra.mxu0 0.0
        %1544 = vmatprep.subr.mxu0 0.0
        %1545 = vmatpush2.msra.mxu0 0.0
        %1546 = vmatprep.subr.mxu0 0.0
        %1547 = vmatpush2.msra.mxu0 0.0
        %1548 = vmatprep.subr.mxu0 0.0
        %1549 = vmatpush2.msra.mxu0 0.0
        %1550 = vmatprep.subr.mxu0 0.0
        %1551 = vmatpush2.msra.mxu0 0.0
        %1552 = vmatprep.subr.mxu0 0.0
        %1553 = vmatpush2.msra.mxu0 0.0
        %1554 = vmatprep.subr.mxu0 0.0
        %1555 = vmatpush2.msra.mxu0 0.0
        %1556 = vmatprep.subr.mxu0 0.0
        %1557 = vmatpush2.msra.mxu0 0.0
        %1558 = vmatprep.subr.mxu0 0.0
        %1559 = vmatpush2.msra.mxu0 0.0
        %1560 = vmatprep.subr.mxu0 0.0
        %1561 = vmatpush2.msra.mxu0 0.0
        %1562 = vmatprep.mubr.f32.mxu0 0.0
        %1563 = vmatmul.mubr.f32.gmra.mxu0 %v1320
        %v1564 = vpop.f32.mrf.mxu0
        %v1565 = vadd.f32 %v1488, %v1564
        %v1566 = vpop.f32.mrf.mxu0
        %v1567 = vadd.f32 %v1490, %v1566
        %1568 = vmatprep.mubr.f32.mxu0 0.0
        %1569 = vmatmul.mubr.f32.gmra.mxu0 %v1323
        %v1570 = vpop.f32.mrf.mxu0
        %v1571 = vadd.f32 %v1494, %v1570
        %v1572 = vpop.f32.mrf.mxu0
        %v1573 = vadd.f32 %v1496, %v1572
        %1574 = vdwg.mxu0
        %1575 = vmatprep.subr.mxu0 %v1003
        %1576 = vmatpush1.msra.mxu0 %v1002
        %1577 = vmatprep.subr.mxu0 %v997
        %1578 = vmatpush1.msra.mxu0 %v996
        %1579 = vmatprep.subr.mxu0 %v991
        %1580 = vmatpush1.msra.mxu0 %v990
        %1581 = vmatprep.subr.mxu0 %v985
        %1582 = vmatpush1.msra.mxu0 %v984
        %1583 = vmatprep.subr.mxu0 %v979
        %1584 = vmatpush1.msra.mxu0 %v978
        %1585 = vmatprep.subr.mxu0 %v973
        %1586 = vmatpush1.msra.mxu0 %v972
        %1587 = vmatprep.subr.mxu0 %v967
        %1588 = vmatpush1.msra.mxu0 %v966
        %1589 = vmatprep.subr.mxu0 %v961
        %1590 = vmatpush1.msra.mxu0 %v960
        %1591 = vmatprep.subr.mxu0 %v955
        %1592 = vmatpush1.msra.mxu0 %v954
        %1593 = vmatprep.subr.mxu0 %v949
        %1594 = vmatpush1.msra.mxu0 %v948
        %1595 = vmatprep.subr.mxu0 %v943
        %1596 = vmatpush1.msra.mxu0 %v942
        %1597 = vmatprep.subr.mxu0 %v937
        %1598 = vmatpush1.msra.mxu0 %v936
        %1599 = vmatprep.subr.mxu0 %v931
        %1600 = vmatpush1.msra.mxu0 %v930
        %1601 = vmatprep.subr.mxu0 %v925
        %1602 = vmatpush1.msra.mxu0 %v924
        %1603 = vmatprep.subr.mxu0 %v919
        %1604 = vmatpush1.msra.mxu0 %v918
        %1605 = vmatprep.subr.mxu0 %v913
        %1606 = vmatpush1.msra.mxu0 %v912
        %1607 = vmatprep.subr.mxu0 %v1099
        %1608 = vmatpush2.msra.mxu0 %v1098
        %1609 = vmatprep.subr.mxu0 %v1093
        %1610 = vmatpush2.msra.mxu0 %v1092
        %1611 = vmatprep.subr.mxu0 %v1087
        %1612 = vmatpush2.msra.mxu0 %v1086
        %1613 = vmatprep.subr.mxu0 %v1081
        %1614 = vmatpush2.msra.mxu0 %v1080
        %1615 = vmatprep.subr.mxu0 %v1075
        %1616 = vmatpush2.msra.mxu0 %v1074
        %1617 = vmatprep.subr.mxu0 %v1069
        %1618 = vmatpush2.msra.mxu0 %v1068
        %1619 = vmatprep.subr.mxu0 %v1063
        %1620 = vmatpush2.msra.mxu0 %v1062
        %1621 = vmatprep.subr.mxu0 %v1057
        %1622 = vmatpush2.msra.mxu0 %v1056
        %1623 = vmatprep.subr.mxu0 %v1051
        %1624 = vmatpush2.msra.mxu0 %v1050
        %1625 = vmatprep.subr.mxu0 %v1045
        %1626 = vmatpush2.msra.mxu0 %v1044
        %1627 = vmatprep.subr.mxu0 %v1039
        %1628 = vmatpush2.msra.mxu0 %v1038
        %1629 = vmatprep.subr.mxu0 %v1033
        %1630 = vmatpush2.msra.mxu0 %v1032
        %1631 = vmatprep.subr.mxu0 %v1027
        %1632 = vmatpush2.msra.mxu0 %v1026
        %1633 = vmatprep.subr.mxu0 %v1021
        %1634 = vmatpush2.msra.mxu0 %v1020
        %1635 = vmatprep.subr.mxu0 %v1015
        %1636 = vmatpush2.msra.mxu0 %v1014
        %1637 = vmatprep.subr.mxu0 %v1009
        %1638 = vmatpush2.msra.mxu0 %v1008
        %1639 = vmatprep.mubr.f32.mxu0 %v901
        %1640 = vmatmul.mubr.f32.gmra.mxu0 %v900
        %v1641 = vpop.f32.mrf.mxu0
        %v1642 = vadd.f32 0.0, %v1641
        %v1643 = vpop.f32.mrf.mxu0
        %v1644 = vadd.f32 0.0, %v1643
        %1645 = vmatprep.mubr.f32.mxu0 %v906
        %1646 = vmatmul.mubr.f32.gmra.mxu0 %v905
        %v1647 = vpop.f32.mrf.mxu0
        %v1648 = vadd.f32 0.0, %v1647
        %v1649 = vpop.f32.mrf.mxu0
        %v1650 = vadd.f32 0.0, %v1649
        %1651 = vdwg.mxu0
        %1652 = vmatprep.subr.mxu0 %v1195
        %1653 = vmatpush1.msra.mxu0 %v1194
        %1654 = vmatprep.subr.mxu0 %v1189
        %1655 = vmatpush1.msra.mxu0 %v1188
        %1656 = vmatprep.subr.mxu0 %v1183
        %1657 = vmatpush1.msra.mxu0 %v1182
        %1658 = vmatprep.subr.mxu0 %v1177
        %1659 = vmatpush1.msra.mxu0 %v1176
        %1660 = vmatprep.subr.mxu0 %v1171
        %1661 = vmatpush1.msra.mxu0 %v1170
        %1662 = vmatprep.subr.mxu0 %v1165
        %1663 = vmatpush1.msra.mxu0 %v1164
        %1664 = vmatprep.subr.mxu0 %v1159
        %1665 = vmatpush1.msra.mxu0 %v1158
        %1666 = vmatprep.subr.mxu0 %v1153
        %1667 = vmatpush1.msra.mxu0 %v1152
        %1668 = vmatprep.subr.mxu0 %v1147
        %1669 = vmatpush1.msra.mxu0 %v1146
        %1670 = vmatprep.subr.mxu0 %v1141
        %1671 = vmatpush1.msra.mxu0 %v1140
        %1672 = vmatprep.subr.mxu0 %v1135
        %1673 = vmatpush1.msra.mxu0 %v1134
        %1674 = vmatprep.subr.mxu0 %v1129
        %1675 = vmatpush1.msra.mxu0 %v1128
        %1676 = vmatprep.subr.mxu0 %v1123
        %1677 = vmatpush1.msra.mxu0 %v1122
        %1678 = vmatprep.subr.mxu0 %v1117
        %1679 = vmatpush1.msra.mxu0 %v1116
        %1680 = vmatprep.subr.mxu0 %v1111
        %1681 = vmatpush1.msra.mxu0 %v1110
        %1682 = vmatprep.subr.mxu0 %v1105
        %1683 = vmatpush1.msra.mxu0 %v1104
        %1684 = vmatprep.subr.mxu0 %v1291
        %1685 = vmatpush2.msra.mxu0 %v1290
        %1686 = vmatprep.subr.mxu0 %v1285
        %1687 = vmatpush2.msra.mxu0 %v1284
        %1688 = vmatprep.subr.mxu0 %v1279
        %1689 = vmatpush2.msra.mxu0 %v1278
        %1690 = vmatprep.subr.mxu0 %v1273
        %1691 = vmatpush2.msra.mxu0 %v1272
        %1692 = vmatprep.subr.mxu0 %v1267
        %1693 = vmatpush2.msra.mxu0 %v1266
        %1694 = vmatprep.subr.mxu0 %v1261
        %1695 = vmatpush2.msra.mxu0 %v1260
        %1696 = vmatprep.subr.mxu0 %v1255
        %1697 = vmatpush2.msra.mxu0 %v1254
        %1698 = vmatprep.subr.mxu0 %v1249
        %1699 = vmatpush2.msra.mxu0 %v1248
        %1700 = vmatprep.subr.mxu0 %v1243
        %1701 = vmatpush2.msra.mxu0 %v1242
        %1702 = vmatprep.subr.mxu0 %v1237
        %1703 = vmatpush2.msra.mxu0 %v1236
        %1704 = vmatprep.subr.mxu0 %v1231
        %1705 = vmatpush2.msra.mxu0 %v1230
        %1706 = vmatprep.subr.mxu0 %v1225
        %1707 = vmatpush2.msra.mxu0 %v1224
        %1708 = vmatprep.subr.mxu0 %v1219
        %1709 = vmatpush2.msra.mxu0 %v1218
        %1710 = vmatprep.subr.mxu0 %v1213
        %1711 = vmatpush2.msra.mxu0 %v1212
        %1712 = vmatprep.subr.mxu0 %v1207
        %1713 = vmatpush2.msra.mxu0 %v1206
        %1714 = vmatprep.subr.mxu0 %v1201
        %1715 = vmatpush2.msra.mxu0 %v1200
        %1716 = vmatprep.mubr.f32.mxu0 %v903
        %1717 = vmatmul.mubr.f32.gmra.mxu0 %v902
        %v1718 = vpop.f32.mrf.mxu0
        %v1719 = vadd.f32 %v1642, %v1718
        %v1720 = vpop.f32.mrf.mxu0
        %v1721 = vadd.f32 %v1644, %v1720
        %1722 = vmatprep.mubr.f32.mxu0 %v908
        %1723 = vmatmul.mubr.f32.gmra.mxu0 %v907
        %v1724 = vpop.f32.mrf.mxu0
        %v1725 = vadd.f32 %v1648, %v1724
        %v1726 = vpop.f32.mrf.mxu0
        %v1727 = vadd.f32 %v1650, %v1726
        %1728 = vdwg.mxu0
        %1729 = vmatprep.subr.mxu0 0.0
        %1730 = vmatpush1.msra.mxu0 0.0
        %1731 = vmatprep.subr.mxu0 0.0
        %1732 = vmatpush1.msra.mxu0 0.0
        %1733 = vmatprep.subr.mxu0 0.0
        %1734 = vmatpush1.msra.mxu0 0.0
        %1735 = vmatprep.subr.mxu0 0.0
        %1736 = vmatpush1.msra.mxu0 0.0
        %1737 = vmatprep.subr.mxu0 0.0
        %1738 = vmatpush1.msra.mxu0 0.0
        %1739 = vmatprep.subr.mxu0 0.0
        %1740 = vmatpush1.msra.mxu0 0.0
        %1741 = vmatprep.subr.mxu0 0.0
        %1742 = vmatpush1.msra.mxu0 0.0
        %1743 = vmatprep.subr.mxu0 0.0
        %1744 = vmatpush1.msra.mxu0 0.0
        %1745 = vmatprep.subr.mxu0 0.0
        %1746 = vmatpush1.msra.mxu0 0.0
        %1747 = vmatprep.subr.mxu0 0.0
        %1748 = vmatpush1.msra.mxu0 0.0
        %1749 = vmatprep.subr.mxu0 0.0
        %1750 = vmatpush1.msra.mxu0 0.0
        %1751 = vmatprep.subr.mxu0 0.0
        %1752 = vmatpush1.msra.mxu0 0.0
        %1753 = vmatprep.subr.mxu0 %v1336
        %1754 = vmatpush1.msra.mxu0 %v1333
        %1755 = vmatprep.subr.mxu0 %v1309
        %1756 = vmatpush1.msra.mxu0 %v1308
        %1757 = vmatprep.subr.mxu0 %v1303
        %1758 = vmatpush1.msra.mxu0 %v1302
        %1759 = vmatprep.subr.mxu0 %v1297
        %1760 = vmatpush1.msra.mxu0 %v1296
        %1761 = vmatprep.subr.mxu0 0.0
        %1762 = vmatpush2.msra.mxu0 0.0
        %1763 = vmatprep.subr.mxu0 0.0
        %1764 = vmatpush2.msra.mxu0 0.0
        %1765 = vmatprep.subr.mxu0 0.0
        %1766 = vmatpush2.msra.mxu0 0.0
        %1767 = vmatprep.subr.mxu0 0.0
        %1768 = vmatpush2.msra.mxu0 0.0
        %1769 = vmatprep.subr.mxu0 0.0
        %1770 = vmatpush2.msra.mxu0 0.0
        %1771 = vmatprep.subr.mxu0 0.0
        %1772 = vmatpush2.msra.mxu0 0.0
        %1773 = vmatprep.subr.mxu0 0.0
        %1774 = vmatpush2.msra.mxu0 0.0
        %1775 = vmatprep.subr.mxu0 0.0
        %1776 = vmatpush2.msra.mxu0 0.0
        %1777 = vmatprep.subr.mxu0 0.0
        %1778 = vmatpush2.msra.mxu0 0.0
        %1779 = vmatprep.subr.mxu0 0.0
        %1780 = vmatpush2.msra.mxu0 0.0
        %1781 = vmatprep.subr.mxu0 0.0
        %1782 = vmatpush2.msra.mxu0 0.0
        %1783 = vmatprep.subr.mxu0 0.0
        %1784 = vmatpush2.msra.mxu0 0.0
        %1785 = vmatprep.subr.mxu0 0.0
        %1786 = vmatpush2.msra.mxu0 0.0
        %1787 = vmatprep.subr.mxu0 0.0
        %1788 = vmatpush2.msra.mxu0 0.0
        %1789 = vmatprep.subr.mxu0 0.0
        %1790 = vmatpush2.msra.mxu0 0.0
        %1791 = vmatprep.subr.mxu0 0.0
        %1792 = vmatpush2.msra.mxu0 0.0
        %1793 = vmatprep.mubr.f32.mxu0 0.0
        %1794 = vmatmul.mubr.f32.gmra.mxu0 %v1320
        %v1795 = vpop.f32.mrf.mxu0
        %v1796 = vadd.f32 %v1719, %v1795
        %v1797 = vpop.f32.mrf.mxu0
        %v1798 = vadd.f32 %v1721, %v1797
        %1799 = vmatprep.mubr.f32.mxu0 0.0
        %1800 = vmatmul.mubr.f32.gmra.mxu0 %v1323
        %v1801 = vpop.f32.mrf.mxu0
        %v1802 = vadd.f32 %v1725, %v1801
        %v1803 = vpop.f32.mrf.mxu0
        %v1804 = vadd.f32 %v1727, %v1803
        %1805 = vdwg.mxu0
        %1806 = vmatprep.subr.mxu0 %v1005
        %1807 = vmatpush1.msra.mxu0 %v1004
        %1808 = vmatprep.subr.mxu0 %v999
        %1809 = vmatpush1.msra.mxu0 %v998
        %1810 = vmatprep.subr.mxu0 %v993
        %1811 = vmatpush1.msra.mxu0 %v992
        %1812 = vmatprep.subr.mxu0 %v987
        %1813 = vmatpush1.msra.mxu0 %v986
        %1814 = vmatprep.subr.mxu0 %v981
        %1815 = vmatpush1.msra.mxu0 %v980
        %1816 = vmatprep.subr.mxu0 %v975
        %1817 = vmatpush1.msra.mxu0 %v974
        %1818 = vmatprep.subr.mxu0 %v969
        %1819 = vmatpush1.msra.mxu0 %v968
        %1820 = vmatprep.subr.mxu0 %v963
        %1821 = vmatpush1.msra.mxu0 %v962
        %1822 = vmatprep.subr.mxu0 %v957
        %1823 = vmatpush1.msra.mxu0 %v956
        %1824 = vmatprep.subr.mxu0 %v951
        %1825 = vmatpush1.msra.mxu0 %v950
        %1826 = vmatprep.subr.mxu0 %v945
        %1827 = vmatpush1.msra.mxu0 %v944
        %1828 = vmatprep.subr.mxu0 %v939
        %1829 = vmatpush1.msra.mxu0 %v938
        %1830 = vmatprep.subr.mxu0 %v933
        %1831 = vmatpush1.msra.mxu0 %v932
        %1832 = vmatprep.subr.mxu0 %v927
        %1833 = vmatpush1.msra.mxu0 %v926
        %1834 = vmatprep.subr.mxu0 %v921
        %1835 = vmatpush1.msra.mxu0 %v920
        %1836 = vmatprep.subr.mxu0 %v915
        %1837 = vmatpush1.msra.mxu0 %v914
        %1838 = vmatprep.subr.mxu0 %v1101
        %1839 = vmatpush2.msra.mxu0 %v1100
        %1840 = vmatprep.subr.mxu0 %v1095
        %1841 = vmatpush2.msra.mxu0 %v1094
        %1842 = vmatprep.subr.mxu0 %v1089
        %1843 = vmatpush2.msra.mxu0 %v1088
        %1844 = vmatprep.subr.mxu0 %v1083
        %1845 = vmatpush2.msra.mxu0 %v1082
        %1846 = vmatprep.subr.mxu0 %v1077
        %1847 = vmatpush2.msra.mxu0 %v1076
        %1848 = vmatprep.subr.mxu0 %v1071
        %1849 = vmatpush2.msra.mxu0 %v1070
        %1850 = vmatprep.subr.mxu0 %v1065
        %1851 = vmatpush2.msra.mxu0 %v1064
        %1852 = vmatprep.subr.mxu0 %v1059
        %1853 = vmatpush2.msra.mxu0 %v1058
        %1854 = vmatprep.subr.mxu0 %v1053
        %1855 = vmatpush2.msra.mxu0 %v1052
        %1856 = vmatprep.subr.mxu0 %v1047
        %1857 = vmatpush2.msra.mxu0 %v1046
        %1858 = vmatprep.subr.mxu0 %v1041
        %1859 = vmatpush2.msra.mxu0 %v1040
        %1860 = vmatprep.subr.mxu0 %v1035
        %1861 = vmatpush2.msra.mxu0 %v1034
        %1862 = vmatprep.subr.mxu0 %v1029
        %1863 = vmatpush2.msra.mxu0 %v1028
        %1864 = vmatprep.subr.mxu0 %v1023
        %1865 = vmatpush2.msra.mxu0 %v1022
        %1866 = vmatprep.subr.mxu0 %v1017
        %1867 = vmatpush2.msra.mxu0 %v1016
        %1868 = vmatprep.subr.mxu0 %v1011
        %1869 = vmatpush2.msra.mxu0 %v1010
        %1870 = vmatprep.mubr.f32.mxu0 %v901
        %1871 = vmatmul.mubr.f32.gmra.mxu0 %v900
        %v1872 = vpop.f32.mrf.mxu0
        %v1873 = vadd.f32 0.0, %v1872
        %v1874 = vpop.f32.mrf.mxu0
        %v1875 = vadd.f32 0.0, %v1874
        %1876 = vmatprep.mubr.f32.mxu0 %v906
        %1877 = vmatmul.mubr.f32.gmra.mxu0 %v905
        %v1878 = vpop.f32.mrf.mxu0
        %v1879 = vadd.f32 0.0, %v1878
        %v1880 = vpop.f32.mrf.mxu0
        %v1881 = vadd.f32 0.0, %v1880
        %1882 = vdwg.mxu0
        %1883 = vmatprep.subr.mxu0 %v1197
        %1884 = vmatpush1.msra.mxu0 %v1196
        %1885 = vmatprep.subr.mxu0 %v1191
        %1886 = vmatpush1.msra.mxu0 %v1190
        %1887 = vmatprep.subr.mxu0 %v1185
        %1888 = vmatpush1.msra.mxu0 %v1184
        %1889 = vmatprep.subr.mxu0 %v1179
        %1890 = vmatpush1.msra.mxu0 %v1178
        %1891 = vmatprep.subr.mxu0 %v1173
        %1892 = vmatpush1.msra.mxu0 %v1172
        %1893 = vmatprep.subr.mxu0 %v1167
        %1894 = vmatpush1.msra.mxu0 %v1166
        %1895 = vmatprep.subr.mxu0 %v1161
        %1896 = vmatpush1.msra.mxu0 %v1160
        %1897 = vmatprep.subr.mxu0 %v1155
        %1898 = vmatpush1.msra.mxu0 %v1154
        %1899 = vmatprep.subr.mxu0 %v1149
        %1900 = vmatpush1.msra.mxu0 %v1148
        %1901 = vmatprep.subr.mxu0 %v1143
        %1902 = vmatpush1.msra.mxu0 %v1142
        %1903 = vmatprep.subr.mxu0 %v1137
        %1904 = vmatpush1.msra.mxu0 %v1136
        %1905 = vmatprep.subr.mxu0 %v1131
        %1906 = vmatpush1.msra.mxu0 %v1130
        %1907 = vmatprep.subr.mxu0 %v1125
        %1908 = vmatpush1.msra.mxu0 %v1124
        %1909 = vmatprep.subr.mxu0 %v1119
        %1910 = vmatpush1.msra.mxu0 %v1118
        %1911 = vmatprep.subr.mxu0 %v1113
        %1912 = vmatpush1.msra.mxu0 %v1112
        %1913 = vmatprep.subr.mxu0 %v1107
        %1914 = vmatpush1.msra.mxu0 %v1106
        %1915 = vmatprep.subr.mxu0 %v1293
        %1916 = vmatpush2.msra.mxu0 %v1292
        %1917 = vmatprep.subr.mxu0 %v1287
        %1918 = vmatpush2.msra.mxu0 %v1286
        %1919 = vmatprep.subr.mxu0 %v1281
        %1920 = vmatpush2.msra.mxu0 %v1280
        %1921 = vmatprep.subr.mxu0 %v1275
        %1922 = vmatpush2.msra.mxu0 %v1274
        %1923 = vmatprep.subr.mxu0 %v1269
        %1924 = vmatpush2.msra.mxu0 %v1268
        %1925 = vmatprep.subr.mxu0 %v1263
        %1926 = vmatpush2.msra.mxu0 %v1262
        %1927 = vmatprep.subr.mxu0 %v1257
        %1928 = vmatpush2.msra.mxu0 %v1256
        %1929 = vmatprep.subr.mxu0 %v1251
        %1930 = vmatpush2.msra.mxu0 %v1250
        %1931 = vmatprep.subr.mxu0 %v1245
        %1932 = vmatpush2.msra.mxu0 %v1244
        %1933 = vmatprep.subr.mxu0 %v1239
        %1934 = vmatpush2.msra.mxu0 %v1238
        %1935 = vmatprep.subr.mxu0 %v1233
        %1936 = vmatpush2.msra.mxu0 %v1232
        %1937 = vmatprep.subr.mxu0 %v1227
        %1938 = vmatpush2.msra.mxu0 %v1226
        %1939 = vmatprep.subr.mxu0 %v1221
        %1940 = vmatpush2.msra.mxu0 %v1220
        %1941 = vmatprep.subr.mxu0 %v1215
        %1942 = vmatpush2.msra.mxu0 %v1214
        %1943 = vmatprep.subr.mxu0 %v1209
        %1944 = vmatpush2.msra.mxu0 %v1208
        %1945 = vmatprep.subr.mxu0 %v1203
        %1946 = vmatpush2.msra.mxu0 %v1202
        %1947 = vmatprep.mubr.f32.mxu0 %v903
        %1948 = vmatmul.mubr.f32.gmra.mxu0 %v902
        %v1949 = vpop.f32.mrf.mxu0
        %v1950 = vadd.f32 %v1873, %v1949
        %v1951 = vpop.f32.mrf.mxu0
        %v1952 = vadd.f32 %v1875, %v1951
        %1953 = vmatprep.mubr.f32.mxu0 %v908
        %1954 = vmatmul.mubr.f32.gmra.mxu0 %v907
        %v1955 = vpop.f32.mrf.mxu0
        %v1956 = vadd.f32 %v1879, %v1955
        %v1957 = vpop.f32.mrf.mxu0
        %v1958 = vadd.f32 %v1881, %v1957
        %1959 = vdwg.mxu0
        %1960 = vmatprep.subr.mxu0 0.0
        %1961 = vmatpush1.msra.mxu0 0.0
        %1962 = vmatprep.subr.mxu0 0.0
        %1963 = vmatpush1.msra.mxu0 0.0
        %1964 = vmatprep.subr.mxu0 0.0
        %1965 = vmatpush1.msra.mxu0 0.0
        %1966 = vmatprep.subr.mxu0 0.0
        %1967 = vmatpush1.msra.mxu0 0.0
        %1968 = vmatprep.subr.mxu0 0.0
        %1969 = vmatpush1.msra.mxu0 0.0
        %1970 = vmatprep.subr.mxu0 0.0
        %1971 = vmatpush1.msra.mxu0 0.0
        %1972 = vmatprep.subr.mxu0 0.0
        %1973 = vmatpush1.msra.mxu0 0.0
        %1974 = vmatprep.subr.mxu0 0.0
        %1975 = vmatpush1.msra.mxu0 0.0
        %1976 = vmatprep.subr.mxu0 0.0
        %1977 = vmatpush1.msra.mxu0 0.0
        %1978 = vmatprep.subr.mxu0 0.0
        %1979 = vmatpush1.msra.mxu0 0.0
        %1980 = vmatprep.subr.mxu0 0.0
        %1981 = vmatpush1.msra.mxu0 0.0
        %1982 = vmatprep.subr.mxu0 0.0
        %1983 = vmatpush1.msra.mxu0 0.0
        %1984 = vmatprep.subr.mxu0 %v1342
        %1985 = vmatpush1.msra.mxu0 %v1339
        %1986 = vmatprep.subr.mxu0 %v1311
        %1987 = vmatpush1.msra.mxu0 %v1310
        %1988 = vmatprep.subr.mxu0 %v1305
        %1989 = vmatpush1.msra.mxu0 %v1304
        %1990 = vmatprep.subr.mxu0 %v1299
        %1991 = vmatpush1.msra.mxu0 %v1298
        %1992 = vmatprep.subr.mxu0 0.0
        %1993 = vmatpush2.msra.mxu0 0.0
        %1994 = vmatprep.subr.mxu0 0.0
        %1995 = vmatpush2.msra.mxu0 0.0
        %1996 = vmatprep.subr.mxu0 0.0
        %1997 = vmatpush2.msra.mxu0 0.0
        %1998 = vmatprep.subr.mxu0 0.0
        %1999 = vmatpush2.msra.mxu0 0.0
        %2000 = vmatprep.subr.mxu0 0.0
        %2001 = vmatpush2.msra.mxu0 0.0
        %2002 = vmatprep.subr.mxu0 0.0
        %2003 = vmatpush2.msra.mxu0 0.0
        %2004 = vmatprep.subr.mxu0 0.0
        %2005 = vmatpush2.msra.mxu0 0.0
        %2006 = vmatprep.subr.mxu0 0.0
        %2007 = vmatpush2.msra.mxu0 0.0
        %2008 = vmatprep.subr.mxu0 0.0
        %2009 = vmatpush2.msra.mxu0 0.0
        %2010 = vmatprep.subr.mxu0 0.0
        %2011 = vmatpush2.msra.mxu0 0.0
        %2012 = vmatprep.subr.mxu0 0.0
        %2013 = vmatpush2.msra.mxu0 0.0
        %2014 = vmatprep.subr.mxu0 0.0
        %2015 = vmatpush2.msra.mxu0 0.0
        %2016 = vmatprep.subr.mxu0 0.0
        %2017 = vmatpush2.msra.mxu0 0.0
        %2018 = vmatprep.subr.mxu0 0.0
        %2019 = vmatpush2.msra.mxu0 0.0
        %2020 = vmatprep.subr.mxu0 0.0
        %2021 = vmatpush2.msra.mxu0 0.0
        %2022 = vmatprep.subr.mxu0 0.0
        %2023 = vmatpush2.msra.mxu0 0.0
        %2024 = vmatprep.mubr.f32.mxu0 0.0
        %2025 = vmatmul.mubr.f32.gmra.mxu0 %v1320
        %v2026 = vpop.f32.mrf.mxu0
        %v2027 = vadd.f32 %v1950, %v2026
        %v2028 = vpop.f32.mrf.mxu0
        %v2029 = vadd.f32 %v1952, %v2028
        %2030 = vmatprep.mubr.f32.mxu0 0.0
        %2031 = vmatmul.mubr.f32.gmra.mxu0 %v1323
        %v2032 = vpop.f32.mrf.mxu0
        %v2033 = vadd.f32 %v1956, %v2032
        %v2034 = vpop.f32.mrf.mxu0
        %v2035 = vadd.f32 %v1958, %v2034
        %2036 = vdwg.mxu0
        %2041 = vrot.lane.b32.xlu0 %v1567, 76
        %v2042 = vpop.permute.xlu0 %2041
        %2043 = vrot.lane.b32.xlu0 %v1796, 76
        %v2044 = vpop.permute.xlu0 %2043
        %2045 = vrot.lane.b32.xlu0 %v1573, 76
        %v2046 = vpop.permute.xlu0 %2045
        %2047 = vrot.lane.b32.xlu0 %v1802, 76
        %v2048 = vpop.permute.xlu0 %2047
        %vm2049 = vcmask 621568
        %v2050 = vsel %vm2049, %v2042, %v2044
        %v2051 = vsel %vm2049, %v2046, %v2048
        %v2056 = vmax.f32 %v1565, %v2050
        %v2057 = vmax.f32 %v1567, %v2044
        %v2058 = vmax.f32 %v1571, %v2051
        %v2059 = vmax.f32 %v1573, %v2048
        %2064 = vrot.lane.b32.xlu0 %v2027, 76
        %v2065 = vpop.permute.xlu0 %2064
        %2066 = vrot.lane.b32.xlu0 %v2029, 76
        %v2067 = vpop.permute.xlu0 %2066
        %2068 = vrot.lane.b32.xlu0 %v2033, 76
        %v2069 = vpop.permute.xlu0 %2068
        %2070 = vrot.lane.b32.xlu0 %v2035, 76
        %v2071 = vpop.permute.xlu0 %2070
        %v2072 = vsel %vm2049, %v2065, %v2067
        %v2073 = vsel %vm2049, %v2069, %v2071
        %v2080 = vmax.f32 %v1796, %v2065
        %v2081 = vmax.f32 %v1798, %v2072
        %v2082 = vmax.f32 %v2027, %v2067
        %v2083 = vmax.f32 %v1802, %v2069
        %v2084 = vmax.f32 %v1804, %v2073
        %v2085 = vmax.f32 %v2033, %v2071
        %2092 = vrot.lane.b32.xlu0 %v2080, 24
        %v2093 = vpop.permute.xlu0 %2092
        %2094 = vrot.lane.b32.xlu0 %v2081, 24
        %v2095 = vpop.permute.xlu0 %2094
        %2096 = vrot.lane.b32.xlu0 %v2082, 24
        %v2097 = vpop.permute.xlu0 %2096
        %2098 = vrot.lane.b32.xlu0 %v2083, 24
        %v2099 = vpop.permute.xlu0 %2098
        %2100 = vrot.lane.b32.xlu0 %v2084, 24
        %v2101 = vpop.permute.xlu0 %2100
        %2102 = vrot.lane.b32.xlu0 %v2085, 24
        %v2103 = vpop.permute.xlu0 %2102
        %vm2104 = vcmask 195584
        %v2105 = vsel %vm2104, %v2093, %v2095
        %v2106 = vsel %vm2104, %v2095, %v2097
        %v2107 = vsel %vm2104, %v2099, %v2101
        %v2108 = vsel %vm2104, %v2101, %v2103
        %v2113 = vmax.f32 %v2056, %v2105
        %v2114 = vmax.f32 %v2057, %v2106
        %v2115 = vmax.f32 %v2058, %v2107
        %v2116 = vmax.f32 %v2059, %v2108
        %2121 = vrot.lane.b32.xlu0 %v2113, 127
        %v2122 = vpop.permute.xlu0 %2121
        %2123 = vrot.lane.b32.xlu0 %v2114, 127
        %v2124 = vpop.permute.xlu0 %2123
        %2125 = vrot.lane.b32.xlu0 %v2115, 127
        %v2126 = vpop.permute.xlu0 %2125
        %2127 = vrot.lane.b32.xlu0 %v2116, 127
        %v2128 = vpop.permute.xlu0 %2127
        %v2129 = vsel %vm474, %v2122, %v2124
        %v2130 = vsel %vm474, %v2126, %v2128
        %2135 = vrot.lane.b32.xlu0 %v2113, 126
        %v2136 = vpop.permute.xlu0 %2135
        %2137 = vrot.lane.b32.xlu0 %v2114, 126
        %v2138 = vpop.permute.xlu0 %2137
        %2139 = vrot.lane.b32.xlu0 %v2115, 126
        %v2140 = vpop.permute.xlu0 %2139
        %2141 = vrot.lane.b32.xlu0 %v2116, 126
        %v2142 = vpop.permute.xlu0 %2141
        %v2143 = vsel %vm494, %v2136, %v2138
        %v2144 = vsel %vm494, %v2140, %v2142
        %2149 = vrot.lane.b32.xlu0 %v2113, 110
        %v2150 = vpop.permute.xlu0 %2149
        %2151 = vrot.lane.b32.xlu0 %v2114, 110
        %v2152 = vpop.permute.xlu0 %2151
        %2153 = vrot.lane.b32.xlu0 %v2115, 110
        %v2154 = vpop.permute.xlu0 %2153
        %2155 = vrot.lane.b32.xlu0 %v2116, 110
        %v2156 = vpop.permute.xlu0 %2155
        %vm2157 = vcmask 900096
        %v2158 = vsel %vm2157, %v2150, %v2152
        %v2159 = vsel %vm2157, %v2154, %v2156
        %2164 = vrot.lane.b32.xlu0 %v2113, 109
        %v2165 = vpop.permute.xlu0 %2164
        %2166 = vrot.lane.b32.xlu0 %v2114, 109
        %v2167 = vpop.permute.xlu0 %2166
        %2168 = vrot.lane.b32.xlu0 %v2115, 109
        %v2169 = vpop.permute.xlu0 %2168
        %2170 = vrot.lane.b32.xlu0 %v2116, 109
        %v2171 = vpop.permute.xlu0 %2170
        %vm2172 = vcmask 891904
        %v2173 = vsel %vm2172, %v2165, %v2167
        %v2174 = vsel %vm2172, %v2169, %v2171
        %2179 = vrot.lane.b32.xlu0 %v2113, 108
        %v2180 = vpop.permute.xlu0 %2179
        %2181 = vrot.lane.b32.xlu0 %v2114, 108
        %v2182 = vpop.permute.xlu0 %2181
        %2183 = vrot.lane.b32.xlu0 %v2115, 108
        %v2184 = vpop.permute.xlu0 %2183
        %2185 = vrot.lane.b32.xlu0 %v2116, 108
        %v2186 = vpop.permute.xlu0 %2185
        %vm2187 = vcmask 883712
        %v2188 = vsel %vm2187, %v2180, %v2182
        %v2189 = vsel %vm2187, %v2184, %v2186
        %2194 = vrot.lane.b32.xlu0 %v2113, 92
        %v2195 = vpop.permute.xlu0 %2194
        %2196 = vrot.lane.b32.xlu0 %v2114, 92
        %v2197 = vpop.permute.xlu0 %2196
        %2198 = vrot.lane.b32.xlu0 %v2115, 92
        %v2199 = vpop.permute.xlu0 %2198
        %2200 = vrot.lane.b32.xlu0 %v2116, 92
        %v2201 = vpop.permute.xlu0 %2200
        %v2202 = vsel %vm554, %v2195, %v2197
        %v2203 = vsel %vm554, %v2199, %v2201
        %2208 = vrot.lane.b32.xlu0 %v2113, 91
        %v2209 = vpop.permute.xlu0 %2208
        %2210 = vrot.lane.b32.xlu0 %v2114, 91
        %v2211 = vpop.permute.xlu0 %2210
        %2212 = vrot.lane.b32.xlu0 %v2115, 91
        %v2213 = vpop.permute.xlu0 %2212
        %2214 = vrot.lane.b32.xlu0 %v2116, 91
        %v2215 = vpop.permute.xlu0 %2214
        %vm2216 = vcmask 744448
        %v2217 = vsel %vm2216, %v2209, %v2211
        %v2218 = vsel %vm2216, %v2213, %v2215
        %2223 = vrot.lane.b32.xlu0 %v2113, 90
        %v2224 = vpop.permute.xlu0 %2223
        %2225 = vrot.lane.b32.xlu0 %v2114, 90
        %v2226 = vpop.permute.xlu0 %2225
        %2227 = vrot.lane.b32.xlu0 %v2115, 90
        %v2228 = vpop.permute.xlu0 %2227
        %2229 = vrot.lane.b32.xlu0 %v2116, 90
        %v2230 = vpop.permute.xlu0 %2229
        %vm2231 = vcmask 736256
        %v2232 = vsel %vm2231, %v2224, %v2226
        %v2233 = vsel %vm2231, %v2228, %v2230
        %v2238 = vld [vmem:[#allocation6] sm:$0xff]
        %v2239 = vld [vmem:[#allocation6 + $0x8] sm:$0xff]
        %v2240 = vld [vmem:[#allocation6 + $0x10] sm:$0xff]
        %v2241 = vld [vmem:[#allocation6 + $0x18] sm:$0xff]
        %v2242 = vld [vmem:[#allocation6 + $0x20] sm:$0xff]
        %v2243 = vld [vmem:[#allocation6 + $0x28] sm:$0xff]
        %v2244 = vld [vmem:[#allocation6 + $0x30] sm:$0xff]
        %v2245 = vld [vmem:[#allocation6 + $0x38] sm:$0xff]
        %v2246 = vld [vmem:[%s4] sm:$0xff]
        %v2247 = vld [vmem:[%s4 + $0x8] sm:$0xff]
        %v2248 = vld [vmem:[%s4 + $0x10] sm:$0xff]
        %v2249 = vld [vmem:[%s4 + $0x18] sm:$0xff]
        %2251 = vset.pattern.permute.xlu0 0
        %2252 = vperm.xlu0 %2251, %v2246
        %v2253 = vpop.permute.xlu0 %2252
        %2256 = vset.pattern.permute.xlu0 0
        %2257 = vperm.xlu0 %2256, %v2247
        %v2258 = vpop.permute.xlu0 %2257
        %2261 = vset.pattern.permute.xlu0 0
        %2262 = vperm.xlu0 %2261, %v2248
        %v2263 = vpop.permute.xlu0 %2262
        %2266 = vset.pattern.permute.xlu0 0
        %2267 = vperm.xlu0 %2266, %v2249
        %v2268 = vpop.permute.xlu0 %2267
        %vm2270 = vcmask 130048
        %v2272 = vsel %vm2270, %v2239, 0
        %v2275 = vsel %vm2270, %v2241, 0
        %v2278 = vsel %vm2270, %v2243, 0
        %v2281 = vsel %vm2270, %v2245, 0
        %2283 = vmatprep.subr.mxu0 %v2215
        %2284 = vmatpush1.msra.mxu0 %v2218
        %2285 = vmatprep.subr.mxu0 %v2211
        %2286 = vmatpush1.msra.mxu0 %v2217
        %2287 = vmatprep.subr.mxu0 %v2201
        %2288 = vmatpush1.msra.mxu0 %v2203
        %2289 = vmatprep.subr.mxu0 %v2197
        %2290 = vmatpush1.msra.mxu0 %v2202
        %2291 = vmatprep.subr.mxu0 %v2186
        %2292 = vmatpush1.msra.mxu0 %v2189
        %2293 = vmatprep.subr.mxu0 %v2182
        %2294 = vmatpush1.msra.mxu0 %v2188
        %2295 = vmatprep.subr.mxu0 %v2171
        %2296 = vmatpush1.msra.mxu0 %v2174
        %2297 = vmatprep.subr.mxu0 %v2167
        %2298 = vmatpush1.msra.mxu0 %v2173
        %2299 = vmatprep.subr.mxu0 %v2156
        %2300 = vmatpush1.msra.mxu0 %v2159
        %2301 = vmatprep.subr.mxu0 %v2152
        %2302 = vmatpush1.msra.mxu0 %v2158
        %2303 = vmatprep.subr.mxu0 %v2142
        %2304 = vmatpush1.msra.mxu0 %v2144
        %2305 = vmatprep.subr.mxu0 %v2138
        %2306 = vmatpush1.msra.mxu0 %v2143
        %2307 = vmatprep.subr.mxu0 %v2128
        %2308 = vmatpush1.msra.mxu0 %v2130
        %2309 = vmatprep.subr.mxu0 %v2124
        %2310 = vmatpush1.msra.mxu0 %v2129
        %2311 = vmatprep.subr.mxu0 %v2116
        %2312 = vmatpush1.msra.mxu0 %v2115
        %2313 = vmatprep.subr.mxu0 %v2114
        %2314 = vmatpush1.msra.mxu0 %v2113
        %2315 = vmatprep.subr.mxu0 0.0
        %2316 = vmatpush2.msra.mxu0 0.0
        %2317 = vmatprep.subr.mxu0 0.0
        %2318 = vmatpush2.msra.mxu0 0.0
        %2319 = vmatprep.subr.mxu0 0.0
        %2320 = vmatpush2.msra.mxu0 0.0
        %2321 = vmatprep.subr.mxu0 0.0
        %2322 = vmatpush2.msra.mxu0 0.0
        %2323 = vmatprep.subr.mxu0 0.0
        %2324 = vmatpush2.msra.mxu0 0.0
        %2325 = vmatprep.subr.mxu0 0.0
        %2326 = vmatpush2.msra.mxu0 0.0
        %2327 = vmatprep.subr.mxu0 0.0
        %2328 = vmatpush2.msra.mxu0 0.0
        %2329 = vmatprep.subr.mxu0 0.0
        %2330 = vmatpush2.msra.mxu0 0.0
        %2331 = vmatprep.subr.mxu0 0.0
        %2332 = vmatpush2.msra.mxu0 0.0
        %2333 = vmatprep.subr.mxu0 0.0
        %2334 = vmatpush2.msra.mxu0 0.0
        %2335 = vmatprep.subr.mxu0 0.0
        %2336 = vmatpush2.msra.mxu0 0.0
        %2337 = vmatprep.subr.mxu0 0.0
        %2338 = vmatpush2.msra.mxu0 0.0
        %2339 = vmatprep.subr.mxu0 0.0
        %2340 = vmatpush2.msra.mxu0 0.0
        %2341 = vmatprep.subr.mxu0 0.0
        %2342 = vmatpush2.msra.mxu0 0.0
        %2343 = vmatprep.subr.mxu0 %v2230
        %2344 = vmatpush2.msra.mxu0 %v2233
        %2345 = vmatprep.subr.mxu0 %v2226
        %2346 = vmatpush2.msra.mxu0 %v2232
        %2347 = vmatprep.mubr.f32.mxu0 %v2272
        %2348 = vmatmul.mubr.f32.gmra.mxu0 %v2238
        %v2349 = vpop.f32.mrf.mxu0
        %v2350 = vadd.f32 %v2253, %v2349
        %v2351 = vpop.f32.mrf.mxu0
        %v2352 = vadd.f32 %v2253, %v2351
        %2353 = vmatprep.mubr.f32.mxu0 %v2275
        %2354 = vmatmul.mubr.f32.gmra.mxu0 %v2240
        %v2355 = vpop.f32.mrf.mxu0
        %v2356 = vadd.f32 %v2258, %v2355
        %v2357 = vpop.f32.mrf.mxu0
        %v2358 = vadd.f32 %v2258, %v2357
        %2359 = vmatprep.mubr.f32.mxu0 %v2278
        %2360 = vmatmul.mubr.f32.gmra.mxu0 %v2242
        %v2361 = vpop.f32.mrf.mxu0
        %v2362 = vadd.f32 %v2263, %v2361
        %v2363 = vpop.f32.mrf.mxu0
        %v2364 = vadd.f32 %v2263, %v2363
        %2365 = vmatprep.mubr.f32.mxu0 %v2281
        %2366 = vmatmul.mubr.f32.gmra.mxu0 %v2244
        %v2367 = vpop.f32.mrf.mxu0
        %v2368 = vadd.f32 %v2268, %v2367
        %v2369 = vpop.f32.mrf.mxu0
        %v2370 = vadd.f32 %v2268, %v2369
        %2371 = vdwg.mxu0
        %v2372 = vmax.f32 %v2350, 0.0
        %v2373 = vmax.f32 %v2352, 0.0
        %v2374 = vmax.f32 %v2356, 0.0
        %v2375 = vmax.f32 %v2358, 0.0
        %v2376 = vmax.f32 %v2362, 0.0
        %v2377 = vmax.f32 %v2364, 0.0
        %v2378 = vmax.f32 %v2368, 0.0
        %v2379 = vmax.f32 %v2370, 0.0
        %v2380 = vld [vmem:[#allocation10] sm:$0xff]
        %v2381 = vld [vmem:[#allocation10 + $0x8] sm:$0xff]
        %v2382 = vld [vmem:[#allocation10 + $0x10] sm:$0xff]
        %v2383 = vld [vmem:[#allocation10 + $0x18] sm:$0xff]
        %v2384 = vld [vmem:[#allocation10 + $0x20] sm:$0xff]
        %v2385 = vld [vmem:[#allocation10 + $0x28] sm:$0xff]
        %v2386 = vld [vmem:[#allocation10 + $0x30] sm:$0xff]
        %v2387 = vld [vmem:[#allocation10 + $0x38] sm:$0xff]
        %v2388 = vld [vmem:[#allocation10 + $0x40] sm:$0xff]
        %v2389 = vld [vmem:[#allocation10 + $0x48] sm:$0xff]
        %v2390 = vld [vmem:[#allocation10 + $0x50] sm:$0xff]
        %v2391 = vld [vmem:[#allocation10 + $0x58] sm:$0xff]
        %v2392 = vld [vmem:[#allocation10 + $0x60] sm:$0xff]
        %v2393 = vld [vmem:[#allocation10 + $0x68] sm:$0xff]
        %v2394 = vld [vmem:[#allocation10 + $0x70] sm:$0xff]
        %v2395 = vld [vmem:[#allocation10 + $0x78] sm:$0xff]
        %v2396 = vld [vmem:[#allocation10 + $0x80] sm:$0xff]
        %v2397 = vld [vmem:[#allocation10 + $0x88] sm:$0x3f]
        %vm2398 = vcmask 113664
        %v2400 = vsel %vm2398, %v2373, 0
        %v2403 = vsel %vm2398, %v2375, 0
        %v2406 = vsel %vm2398, %v2377, 0
        %v2409 = vsel %vm2398, %v2379, 0
        %v2412 = vsel %vm1325, %v2397, 0
        %2414 = vmatprep.subr.mxu0 0.0
        %2415 = vmatpush1.msra.mxu0 %v2395
        %2416 = vmatprep.subr.mxu0 0.0
        %2417 = vmatpush1.msra.mxu0 %v2394
        %2418 = vmatprep.subr.mxu0 0.0
        %2419 = vmatpush1.msra.mxu0 %v2393
        %2420 = vmatprep.subr.mxu0 0.0
        %2421 = vmatpush1.msra.mxu0 %v2392
        %2422 = vmatprep.subr.mxu0 0.0
        %2423 = vmatpush1.msra.mxu0 %v2391
        %2424 = vmatprep.subr.mxu0 0.0
        %2425 = vmatpush1.msra.mxu0 %v2390
        %2426 = vmatprep.subr.mxu0 0.0
        %2427 = vmatpush1.msra.mxu0 %v2389
        %2428 = vmatprep.subr.mxu0 0.0
        %2429 = vmatpush1.msra.mxu0 %v2388
        %2430 = vmatprep.subr.mxu0 0.0
        %2431 = vmatpush1.msra.mxu0 %v2387
        %2432 = vmatprep.subr.mxu0 0.0
        %2433 = vmatpush1.msra.mxu0 %v2386
        %2434 = vmatprep.subr.mxu0 0.0
        %2435 = vmatpush1.msra.mxu0 %v2385
        %2436 = vmatprep.subr.mxu0 0.0
        %2437 = vmatpush1.msra.mxu0 %v2384
        %2438 = vmatprep.subr.mxu0 0.0
        %2439 = vmatpush1.msra.mxu0 %v2383
        %2440 = vmatprep.subr.mxu0 0.0
        %2441 = vmatpush1.msra.mxu0 %v2382
        %2442 = vmatprep.subr.mxu0 0.0
        %2443 = vmatpush1.msra.mxu0 %v2381
        %2444 = vmatprep.subr.mxu0 0.0
        %2445 = vmatpush1.msra.mxu0 %v2380
        %2446 = vmatprep.subr.mxu0 0.0
        %2447 = vmatpush2.msra.mxu0 0.0
        %2448 = vmatprep.subr.mxu0 0.0
        %2449 = vmatpush2.msra.mxu0 0.0
        %2450 = vmatprep.subr.mxu0 0.0
        %2451 = vmatpush2.msra.mxu0 0.0
        %2452 = vmatprep.subr.mxu0 0.0
        %2453 = vmatpush2.msra.mxu0 0.0
        %2454 = vmatprep.subr.mxu0 0.0
        %2455 = vmatpush2.msra.mxu0 0.0
        %2456 = vmatprep.subr.mxu0 0.0
        %2457 = vmatpush2.msra.mxu0 0.0
        %2458 = vmatprep.subr.mxu0 0.0
        %2459 = vmatpush2.msra.mxu0 0.0
        %2460 = vmatprep.subr.mxu0 0.0
        %2461 = vmatpush2.msra.mxu0 0.0
        %2462 = vmatprep.subr.mxu0 0.0
        %2463 = vmatpush2.msra.mxu0 0.0
        %2464 = vmatprep.subr.mxu0 0.0
        %2465 = vmatpush2.msra.mxu0 0.0
        %2466 = vmatprep.subr.mxu0 0.0
        %2467 = vmatpush2.msra.mxu0 0.0
        %2468 = vmatprep.subr.mxu0 0.0
        %2469 = vmatpush2.msra.mxu0 0.0
        %2470 = vmatprep.subr.mxu0 0.0
        %2471 = vmatpush2.msra.mxu0 0.0
        %2472 = vmatprep.subr.mxu0 0.0
        %2473 = vmatpush2.msra.mxu0 0.0
        %2474 = vmatprep.subr.mxu0 0.0
        %2475 = vmatpush2.msra.mxu0 %v2412
        %2476 = vmatprep.subr.mxu0 0.0
        %2477 = vmatpush2.msra.mxu0 %v2396
        %2478 = vmatprep.mubr.f32.mxu0 %v2400
        %2479 = vmatmul.mubr.f32.gmra.mxu0 %v2372
        %v2480 = vpop.f32.mrf.mxu0
        %v2481 = vadd.f32 0.0, %v2480
        %v2482 = vpop.f32.mrf.mxu0
        %2483 = vmatprep.mubr.f32.mxu0 %v2403
        %2484 = vmatmul.mubr.f32.gmra.mxu0 %v2374
        %v2485 = vpop.f32.mrf.mxu0
        %v2486 = vadd.f32 0.0, %v2485
        %v2487 = vpop.f32.mrf.mxu0
        %2488 = vmatprep.mubr.f32.mxu0 %v2406
        %2489 = vmatmul.mubr.f32.gmra.mxu0 %v2376
        %v2490 = vpop.f32.mrf.mxu0
        %v2491 = vadd.f32 0.0, %v2490
        %v2492 = vpop.f32.mrf.mxu0
        %2493 = vmatprep.mubr.f32.mxu0 %v2409
        %2494 = vmatmul.mubr.f32.gmra.mxu0 %v2378
        %v2495 = vpop.f32.mrf.mxu0
        %v2496 = vadd.f32 0.0, %v2495
        %v2497 = vpop.f32.mrf.mxu0
        %2498 = vdwg.mxu0
        %2503 = vrot.lane.b32.xlu0 %v2481, 96
        %v2504 = vpop.permute.xlu0 %2503
        %2505 = vrot.lane.b32.xlu0 %v2486, 96
        %v2506 = vpop.permute.xlu0 %2505
        %2507 = vrot.lane.b32.xlu0 %v2491, 96
        %v2508 = vpop.permute.xlu0 %2507
        %2509 = vrot.lane.b32.xlu0 %v2496, 96
        %v2510 = vpop.permute.xlu0 %2509
        %v2515 = vmax.f32 %v2481, %v2504
        %v2516 = vmax.f32 %v2486, %v2506
        %v2517 = vmax.f32 %v2491, %v2508
        %v2518 = vmax.f32 %v2496, %v2510
        %2523 = vrot.lane.b32.xlu0 %v2515, 64
        %v2524 = vpop.permute.xlu0 %2523
        %2525 = vrot.lane.b32.xlu0 %v2516, 64
        %v2526 = vpop.permute.xlu0 %2525
        %2527 = vrot.lane.b32.xlu0 %v2517, 64
        %v2528 = vpop.permute.xlu0 %2527
        %2529 = vrot.lane.b32.xlu0 %v2518, 64
        %v2530 = vpop.permute.xlu0 %2529
        %v2535 = vmax.f32 %v2515, %v2524
        %v2536 = vmax.f32 %v2516, %v2526
        %v2537 = vmax.f32 %v2517, %v2528
        %v2538 = vmax.f32 %v2518, %v2530
        %v2539 = vld [vmem:[%s9] sm:$0xff]
        %v2540 = vld [vmem:[%s9 + $0x8] sm:$0xff]
        %v2541 = vld [vmem:[%s9 + $0x10] sm:$0xff]
        %v2542 = vld [vmem:[%s9 + $0x18] sm:$0xff]
        %vm2543 = vcmask 261120
        %v2545 = vsel %vm2543, %v2535, 0
        %v2548 = vsel %vm2543, %v2536, 0
        %v2551 = vsel %vm2543, %v2537, 0
        %v2554 = vsel %vm2543, %v2538, 0
        %2556 = vmatprep.subr.mxu0 0.0
        %2557 = vmatpush1.msra.mxu0 0.0
        %2558 = vmatprep.subr.mxu0 0.0
        %2559 = vmatpush1.msra.mxu0 0.0
        %2560 = vmatprep.subr.mxu0 0.0
        %2561 = vmatpush1.msra.mxu0 0.0
        %2562 = vmatprep.subr.mxu0 0.0
        %2563 = vmatpush1.msra.mxu0 0.0
        %2564 = vmatprep.subr.mxu0 0.0
        %2565 = vmatpush1.msra.mxu0 0.0
        %2566 = vmatprep.subr.mxu0 0.0
        %2567 = vmatpush1.msra.mxu0 0.0
        %2568 = vmatprep.subr.mxu0 0.0
        %2569 = vmatpush1.msra.mxu0 0.0
        %2570 = vmatprep.subr.mxu0 0.0
        %2571 = vmatpush1.msra.mxu0 0.0
        %2572 = vmatprep.subr.mxu0 0.0
        %2573 = vmatpush1.msra.mxu0 0.0
        %2574 = vmatprep.subr.mxu0 0.0
        %2575 = vmatpush1.msra.mxu0 0.0
        %2576 = vmatprep.subr.mxu0 0.0
        %2577 = vmatpush1.msra.mxu0 0.0
        %2578 = vmatprep.subr.mxu0 0.0
        %2579 = vmatpush1.msra.mxu0 0.0
        %2580 = vmatprep.subr.mxu0 0.0
        %2581 = vmatpush1.msra.mxu0 %v2542
        %2582 = vmatprep.subr.mxu0 0.0
        %2583 = vmatpush1.msra.mxu0 %v2541
        %2584 = vmatprep.subr.mxu0 0.0
        %2585 = vmatpush1.msra.mxu0 %v2540
        %2586 = vmatprep.subr.mxu0 0.0
        %2587 = vmatpush1.msra.mxu0 %v2539
        %2588 = vmatprep.subr.mxu0 0.0
        %2589 = vmatpush2.msra.mxu0 0.0
        %2590 = vmatprep.subr.mxu0 0.0
        %2591 = vmatpush2.msra.mxu0 0.0
        %2592 = vmatprep.subr.mxu0 0.0
        %2593 = vmatpush2.msra.mxu0 0.0
        %2594 = vmatprep.subr.mxu0 0.0
        %2595 = vmatpush2.msra.mxu0 0.0
        %2596 = vmatprep.subr.mxu0 0.0
        %2597 = vmatpush2.msra.mxu0 0.0
        %2598 = vmatprep.subr.mxu0 0.0
        %2599 = vmatpush2.msra.mxu0 0.0
        %2600 = vmatprep.subr.mxu0 0.0
        %2601 = vmatpush2.msra.mxu0 0.0
        %2602 = vmatprep.subr.mxu0 0.0
        %2603 = vmatpush2.msra.mxu0 0.0
        %2604 = vmatprep.subr.mxu0 0.0
        %2605 = vmatpush2.msra.mxu0 0.0
        %2606 = vmatprep.subr.mxu0 0.0
        %2607 = vmatpush2.msra.mxu0 0.0
        %2608 = vmatprep.subr.mxu0 0.0
        %2609 = vmatpush2.msra.mxu0 0.0
        %2610 = vmatprep.subr.mxu0 0.0
        %2611 = vmatpush2.msra.mxu0 0.0
        %2612 = vmatprep.subr.mxu0 0.0
        %2613 = vmatpush2.msra.mxu0 0.0
        %2614 = vmatprep.subr.mxu0 0.0
        %2615 = vmatpush2.msra.mxu0 0.0
        %2616 = vmatprep.subr.mxu0 0.0
        %2617 = vmatpush2.msra.mxu0 0.0
        %2618 = vmatprep.subr.mxu0 0.0
        %2619 = vmatpush2.msra.mxu0 0.0
        %2620 = vmatprep.mubr.f32.mxu0 0.0
        %2621 = vmatmul.mubr.f32.gmra.mxu0 %v2545
        %v2622 = vpop.f32.mrf.mxu0
        %v2623 = vadd.f32 0.0, %v2622
        %v2624 = vpop.f32.mrf.mxu0
        %2625 = vmatprep.mubr.f32.mxu0 0.0
        %2626 = vmatmul.mubr.f32.gmra.mxu0 %v2548
        %v2627 = vpop.f32.mrf.mxu0
        %v2628 = vadd.f32 0.0, %v2627
        %v2629 = vpop.f32.mrf.mxu0
        %2630 = vmatprep.mubr.f32.mxu0 0.0
        %2631 = vmatmul.mubr.f32.gmra.mxu0 %v2551
        %v2632 = vpop.f32.mrf.mxu0
        %v2633 = vadd.f32 0.0, %v2632
        %v2634 = vpop.f32.mrf.mxu0
        %2635 = vmatprep.mubr.f32.mxu0 0.0
        %2636 = vmatmul.mubr.f32.gmra.mxu0 %v2554
        %v2637 = vpop.f32.mrf.mxu0
        %v2638 = vadd.f32 0.0, %v2637
        %v2639 = vpop.f32.mrf.mxu0
        %2640 = vdwg.mxu0
        %v2641 = vld [vmem:[#allocation7] sm:$0xff]
        %v2642 = vld [vmem:[#allocation7 + $0x8] sm:$0xf]
        %v2643 = vld [vmem:[%s6] sm:$0xff]
        %v2644 = vld [vmem:[%s6 + $0x8] sm:$0xf]
        %2646 = vset.pattern.permute.xlu0 0
        %2647 = vperm.xlu0 %2646, %v2643
        %v2648 = vpop.permute.xlu0 %2647
        %2651 = vset.pattern.permute.xlu0 0
        %2652 = vperm.xlu0 %2651, %v2644
        %v2653 = vpop.permute.xlu0 %2652
        %v2656 = vsel %vm2543, %v2641, 0
        %v2659 = vsel %vm2543, %v2642, 0
        %2661 = vmatprep.subr.mxu0 0.0
        %2662 = vmatpush1.msra.mxu0 0.0
        %2663 = vmatprep.subr.mxu0 0.0
        %2664 = vmatpush1.msra.mxu0 0.0
        %2665 = vmatprep.subr.mxu0 0.0
        %2666 = vmatpush1.msra.mxu0 0.0
        %2667 = vmatprep.subr.mxu0 0.0
        %2668 = vmatpush1.msra.mxu0 0.0
        %2669 = vmatprep.subr.mxu0 0.0
        %2670 = vmatpush1.msra.mxu0 0.0
        %2671 = vmatprep.subr.mxu0 0.0
        %2672 = vmatpush1.msra.mxu0 0.0
        %2673 = vmatprep.subr.mxu0 0.0
        %2674 = vmatpush1.msra.mxu0 0.0
        %2675 = vmatprep.subr.mxu0 0.0
        %2676 = vmatpush1.msra.mxu0 0.0
        %2677 = vmatprep.subr.mxu0 0.0
        %2678 = vmatpush1.msra.mxu0 0.0
        %2679 = vmatprep.subr.mxu0 0.0
        %2680 = vmatpush1.msra.mxu0 0.0
        %2681 = vmatprep.subr.mxu0 0.0
        %2682 = vmatpush1.msra.mxu0 0.0
        %2683 = vmatprep.subr.mxu0 0.0
        %2684 = vmatpush1.msra.mxu0 0.0
        %2685 = vmatprep.subr.mxu0 0.0
        %2686 = vmatpush1.msra.mxu0 %v2638
        %2687 = vmatprep.subr.mxu0 0.0
        %2688 = vmatpush1.msra.mxu0 %v2633
        %2689 = vmatprep.subr.mxu0 0.0
        %2690 = vmatpush1.msra.mxu0 %v2628
        %2691 = vmatprep.subr.mxu0 0.0
        %2692 = vmatpush1.msra.mxu0 %v2623
        %2693 = vmatprep.subr.mxu0 0.0
        %2694 = vmatpush2.msra.mxu0 0.0
        %2695 = vmatprep.subr.mxu0 0.0
        %2696 = vmatpush2.msra.mxu0 0.0
        %2697 = vmatprep.subr.mxu0 0.0
        %2698 = vmatpush2.msra.mxu0 0.0
        %2699 = vmatprep.subr.mxu0 0.0
        %2700 = vmatpush2.msra.mxu0 0.0
        %2701 = vmatprep.subr.mxu0 0.0
        %2702 = vmatpush2.msra.mxu0 0.0
        %2703 = vmatprep.subr.mxu0 0.0
        %2704 = vmatpush2.msra.mxu0 0.0
        %2705 = vmatprep.subr.mxu0 0.0
        %2706 = vmatpush2.msra.mxu0 0.0
        %2707 = vmatprep.subr.mxu0 0.0
        %2708 = vmatpush2.msra.mxu0 0.0
        %2709 = vmatprep.subr.mxu0 0.0
        %2710 = vmatpush2.msra.mxu0 0.0
        %2711 = vmatprep.subr.mxu0 0.0
        %2712 = vmatpush2.msra.mxu0 0.0
        %2713 = vmatprep.subr.mxu0 0.0
        %2714 = vmatpush2.msra.mxu0 0.0
        %2715 = vmatprep.subr.mxu0 0.0
        %2716 = vmatpush2.msra.mxu0 0.0
        %2717 = vmatprep.subr.mxu0 0.0
        %2718 = vmatpush2.msra.mxu0 0.0
        %2719 = vmatprep.subr.mxu0 0.0
        %2720 = vmatpush2.msra.mxu0 0.0
        %2721 = vmatprep.subr.mxu0 0.0
        %2722 = vmatpush2.msra.mxu0 0.0
        %2723 = vmatprep.subr.mxu0 0.0
        %2724 = vmatpush2.msra.mxu0 0.0
        %2725 = vmatprep.mubr.f32.mxu0 0.0
        %2726 = vmatmul.mubr.f32.gmra.mxu0 %v2656
        %v2727 = vpop.f32.mrf.mxu0
        %v2728 = vadd.f32 %v2648, %v2727
        %v2729 = vpop.f32.mrf.mxu0
        %2730 = vmatprep.mubr.f32.mxu0 0.0
        %2731 = vmatmul.mubr.f32.gmra.mxu0 %v2659
        %v2732 = vpop.f32.mrf.mxu0
        %v2733 = vadd.f32 %v2653, %v2732
        %v2734 = vpop.f32.mrf.mxu0
        %2735 = vdwg.mxu0
        %vm2736 = vcmask 64512
        %2737 = vst.msk [vmem:[%s450] sm:$0xff] %vm2736, %v2728
        %vm2738 = vcmask 60416
        %2739 = vst.msk [vmem:[%s450 + $0x8] sm:$0xf] %vm2738, %v2733
        %p2740 = scmp.lt.s32.totalorder %s27, 1
        %s2741 = scalar_select %p2740, %s27, 1
        %s2742 = smul.addr %s2741, 2
        %s2743 = smul.addr %s2742, 8
        %s2744 = scalar_lea.vmem %s10, %s2743
        // Predicated region
        $region85: #{tpu_custom_call.1} parent=59 // pred_check
          %p2745 = pneg %p260
        $region86: #{tpu_custom_call.1} parent=59 // pred_check_branch
          %2747 = sbr.rel (%p2745) target = $region88
        $region87: #{tpu_custom_call.1} parent=59 // pred_region
          _
        $region88: #{tpu_custom_call.1} parent=59 // pred_fallthru
          _
      $region60: #{tpu_custom_call.1} parent=5 // pred_fallthru
        _
      %p2748 = scmp.le.s32.totalorder 2, %s22
      // Predicated region
      $region89: #{tpu_custom_call.1} parent=5 // pred_check
        %p2749 = pneg %p2748
      $region90: #{tpu_custom_call.1} parent=5 // pred_check_branch
        %2751 = sbr.rel (%p2749) target = $region92
      $region91: #{tpu_custom_call.1} parent=5 // pred_region
        %s2752 = ssub.s32 %s22, 2
        // Predicated region
        $region93: #{tpu_custom_call.1} parent=91 // pred_check
          %p2753 = pneg %p266
        $region94: #{tpu_custom_call.1} parent=91 // pred_check_branch
          %2755 = sbr.rel (%p2753) target = $region96
        $region95: #{tpu_custom_call.1} parent=91 // pred_region
          %p2756 = scmp.lt.s32.totalorder %s28, 1
          %s2757 = scalar_select %p2756, %s28, 1
          %s2758 = smul.addr %s2757, 2
          %s2759 = smul.addr %s2758, 8
          %s2760 = scalar_lea.vmem %s10, %s2759
        $region96: #{tpu_custom_call.1} parent=91 // pred_fallthru
          _
      $region92: #{tpu_custom_call.1} parent=5 // pred_fallthru
        _
    $region6: #{tpu_custom_call.1} parent=1 // loop_footer
      %s26 = sadd.s32 1, %s22
    $region7: #{tpu_custom_call.1} parent=1 // loop_footer_branch
      %21 = sbr.rel target = $region3
    $region8: #{tpu_custom_call.1} parent=1 // loop_exit
      _
    %2761 = vsyncpa [#allocation3], 1
    %s2762 = scalar_lea.sflag [#allocation3], 1
    %2763 = vsyncpa %s2762, 1
    %2764 = vsyncpa [#allocation5], 1
    %2765 = vsyncpa [#allocation8], 1
    %2766 = vsyncpa [#allocation11], 1

</llo_original>
